<compile_context>
chip_gen: v7x
topology: tpu7x:2x2x1
jax: 0.10.0
libtpu: 0.0.40
codegen_flags: <defaults>
</compile_context>

<pallas_src>
import functools

import jax
import jax.numpy as jnp
import numpy as np
from jax.experimental import pallas as pl
from jax.experimental.pallas import tpu as pltpu


# ----------------------------- fused RNN kernel ------------------------------

def _make_rnn_kernel(n_layers):
    """Builds the fused (embedding-output -> n_layers LSTM -> FC) kernel."""
    n_in = 3 * n_layers + 5  # x, (w_ihT, w_hhT, b) per layer, fc_w, fc_b, h0, c0

    def kernel(*args):
        x_ref = args[0]                              # (T*B, E) bf16, time-major-flat
        layer_refs = args[1:1 + 3 * n_layers]        # per layer: w_ihT, w_hhT, bias
        wfc_ref = args[1 + 3 * n_layers]             # (H, O)  bf16
        bfc_ref = args[2 + 3 * n_layers]             # (1, O)  f32
        h0_ref = args[3 + 3 * n_layers]              # (L, B, H) f32
        c0_ref = args[4 + 3 * n_layers]              # (L, B, H) f32
        out_ref = args[n_in]                         # (B, O)  f32
        hn_ref = args[n_in + 1]                      # (L, B, H) f32
        cn_ref = args[n_in + 2]                      # (L, B, H) f32
        gin_scr = args[n_in + 3]                     # (T*B, 4H) f32 VMEM scratch
        y_scr = args[n_in + 4]                       # (2, T*B, H) bf16 VMEM scratch

        _, B, H = h0_ref.shape
        T = x_ref.shape[0] // B

        def run_layer(l, inp_flat):
            w_ihT = layer_refs[3 * l][...]           # (Din, 4H) bf16, VMEM-resident
            w_hhT = layer_refs[3 * l + 1][...]       # (H, 4H)   bf16
            bias = layer_refs[3 * l + 2][...]        # (1, 4H)   f32
            is_last = (l == n_layers - 1)
            dst = l % 2                              # ping-pong output buffer

            # Hoisted input projection: one big MXU call for all T timesteps,
            # bf16 operands, f32 accumulation.
            gin_scr[...] = (
                jnp.dot(inp_flat, w_ihT, preferred_element_type=jnp.float32)
                + bias)

            h = h0_ref[l]                            # (B, H) f32 state
            c = c0_ref[l]                            # (B, H) f32 state

            # Statically unrolled time recurrence (T is small and static here).
            for t in range(T):
                gates = (gin_scr[pl.ds(t * B, B), :]
                         + jnp.dot(h.astype(jnp.bfloat16), w_hhT,
                                   preferred_element_type=jnp.float32))
                # Gate columns were permuted in the wrapper to (i, f, o, g):
                # one contiguous sigmoid slab + one tanh slab (2 EUP launches).
                sig = jax.nn.sigmoid(gates[:, :3 * H])
                g_g = jnp.tanh(gates[:, 3 * H:])
                i_g = sig[:, 0 * H:1 * H]
                f_g = sig[:, 1 * H:2 * H]
                o_g = sig[:, 2 * H:3 * H]
                c = f_g * c + i_g * g_g
                h = o_g * jnp.tanh(c)
                if not is_last:
                    # Per-timestep output only needed as next layer's matmul
                    # input; keep it in VMEM as bf16, never written to HBM.
                    y_scr[dst, pl.ds(t * B, B), :] = h.astype(jnp.bfloat16)

            hn_ref[l] = h
            cn_ref[l] = c
            return h

        inp = x_ref[...]                             # bf16
        h_T = None
        for l in range(n_layers):
            h_T = run_layer(l, inp)
            if l < n_layers - 1:
                inp = y_scr[l % 2]                   # next layer's bf16 input

        # Final FC on the last timestep of the last layer (== h_T).
        out_ref[...] = (
            jnp.dot(h_T.astype(jnp.bfloat16), wfc_ref[...],
                    preferred_element_type=jnp.float32)
            + bfc_ref[...])

    return kernel


# ------------------------------ module wrapper --------------------------------

def _permute_gates_ifog(w, axis=0):
    """Reorder PyTorch LSTM gate blocks (i, f, g, o) -> (i, f, o, g)."""
    i, f, g, o = jnp.split(w, 4, axis=axis)
    return jnp.concatenate([i, f, o, g], axis=axis)


def rnn_forward(params, x_tokens, hidden):
    """Replicates RNN.forward (eval semantics).

    x_tokens : (B, T) int32 token ids
    hidden   : tuple (h0, c0), each (n_layers, B, H)
    returns  : out (B, output_size), (h_n, c_n) each (n_layers, B, H)
    """
    h0_all, c0_all = hidden
    n_layers, B, H = h0_all.shape
    T = x_tokens.shape[1]
    E = params["embedding"].shape[1]
    O = params["fc_w"].shape[0]

    # Time-major-flat embedding gather (row index = t*B + b) -- avoids a
    # separate transpose pass over the activations.  bf16 matmul operand.
    # TODO(synk): for large vocab/E, fuse this gather into the kernel via
    #             scalar-prefetched token ids instead of an HBM round trip.
    tok_tm = jnp.transpose(x_tokens).reshape(-1)                        # (T*B,)
    x_flat = jnp.take(params["embedding"], tok_tm, axis=0).astype(jnp.bfloat16)

    inputs = [x_flat]
    for l in range(n_layers):
        w_ih = _permute_gates_ifog(params[f"w_ih_l{l}"], axis=0)        # (4H, Din)
        w_hh = _permute_gates_ifog(params[f"w_hh_l{l}"], axis=0)        # (4H, H)
        b = _permute_gates_ifog(params[f"b_ih_l{l}"] + params[f"b_hh_l{l}"],
                                axis=0)                                  # (4H,)
        inputs.append(jnp.asarray(w_ih.T, jnp.bfloat16))                 # (Din,4H)
        inputs.append(jnp.asarray(w_hh.T, jnp.bfloat16))                 # (H,4H)
        inputs.append(b.reshape(1, 4 * H).astype(jnp.float32))           # (1,4H)
    inputs.append(jnp.asarray(params["fc_w"].T, jnp.bfloat16))           # (H,O)
    inputs.append(params["fc_b"].reshape(1, O).astype(jnp.float32))      # (1,O)
    inputs.append(h0_all.astype(jnp.float32))                            # (L,B,H)
    inputs.append(c0_all.astype(jnp.float32))                            # (L,B,H)

    # Advisory cost estimate for XLA scheduling around the custom call.
    flops = 2 * B * H * O
    for l in range(n_layers):
        din = E if l == 0 else H
        flops += 2 * T * B * (din + H) * 4 * H
    transcendentals = 5 * n_layers * T * B * H
    bytes_accessed = int(sum(int(np.prod(a.shape)) * a.dtype.itemsize
                             for a in inputs)
                         + (B * O + 2 * n_layers * B * H) * 4)

    out, h_n, c_n = pl.pallas_call(
        _make_rnn_kernel(n_layers),
        out_shape=(jax.ShapeDtypeStruct((B, O), jnp.float32),
                   jax.ShapeDtypeStruct((n_layers, B, H), jnp.float32),
                   jax.ShapeDtypeStruct((n_layers, B, H), jnp.float32)),
        in_specs=[pl.BlockSpec(memory_space=pltpu.MemorySpace.VMEM)] * len(inputs),
        out_specs=(pl.BlockSpec(memory_space=pltpu.MemorySpace.VMEM),) * 3,
        scratch_shapes=[pltpu.VMEM((T * B, 4 * H), jnp.float32),     # gates_in
                        pltpu.VMEM((2, T * B, H), jnp.bfloat16)],    # ping-pong y
        compiler_params=pltpu.CompilerParams(vmem_limit_bytes=32 * 1024 * 1024),
        cost_estimate=pl.CostEstimate(flops=int(flops),
                                      transcendentals=int(transcendentals),
                                      bytes_accessed=bytes_accessed),
    )(*inputs)
    return out, (h_n, c_n)


# --------------------------- pure-JAX reference --------------------------------

def rnn_reference(params, x_tokens, hidden):
    h_all, c_all = hidden
    n_layers, _, H = h_all.shape
    emb = jnp.take(params["embedding"], x_tokens, axis=0)          # (B, T, E)
    x = jnp.transpose(emb, (1, 0, 2)).astype(jnp.float32)          # (T, B, E)
    hs, cs = [], []
    inp = x
    for l in range(n_layers):
        wih = params[f"w_ih_l{l}"].astype(jnp.float32)
        whh = params[f"w_hh_l{l}"].astype(jnp.float32)
        b = (params[f"b_ih_l{l}"] + params[f"b_hh_l{l}"]).astype(jnp.float32)

        def step(carry, x_t, wih=wih, whh=whh, b=b):
            h, c = carry
            g = x_t @ wih.T + h @ whh.T + b
            i = jax.nn.sigmoid(g[:, 0 * H:1 * H])
            f = jax.nn.sigmoid(g[:, 1 * H:2 * H])
            gg = jnp.tanh(g[:, 2 * H:3 * H])
            o = jax.nn.sigmoid(g[:, 3 * H:4 * H])
            c2 = f * c + i * gg
            h2 = o * jnp.tanh(c2)
            return (h2, c2), h2

        (hT, cT), ys = jax.lax.scan(step, (h_all[l], c_all[l]), inp)
        hs.append(hT)
        cs.append(cT)
        inp = ys
    out = inp[-1] @ params["fc_w"].T.astype(jnp.float32) + params["fc_b"]
    return out, (jnp.stack(hs, axis=0), jnp.stack(cs, axis=0))


# ------------------------------ param init -------------------------------------

def init_params(key, vocab_size, output_size, embedding_dim, hidden_dim, n_layers):
    params = {}
    k = 1.0 / jnp.sqrt(hidden_dim)
    keys = jax.random.split(key, 2 + 4 * n_layers + 2)
    ki = iter(keys)

    # nn.Embedding default: N(0, 1)
    params["embedding"] = jax.random.normal(
        next(ki), (vocab_size, embedding_dim), jnp.float32)

    # nn.LSTM default: U(-1/sqrt(H), 1/sqrt(H)) for every weight/bias
    for l in range(n_layers):
        din = embedding_dim if l == 0 else hidden_dim
        params[f"w_ih_l{l}"] = jax.random.uniform(
            next(ki), (4 * hidden_dim, din), jnp.float32, -k, k)
        params[f"w_hh_l{l}"] = jax.random.uniform(
            next(ki), (4 * hidden_dim, hidden_dim), jnp.float32, -k, k)
        params[f"b_ih_l{l}"] = jax.random.uniform(
            next(ki), (4 * hidden_dim,), jnp.float32, -k, k)
        params[f"b_hh_l{l}"] = jax.random.uniform(
            next(ki), (4 * hidden_dim,), jnp.float32, -k, k)

    # nn.Linear default: U(-1/sqrt(H), 1/sqrt(H))
    params["fc_w"] = jax.random.uniform(
        next(ki), (output_size, hidden_dim), jnp.float32, -k, k)
    params["fc_b"] = jax.random.uniform(
        next(ki), (output_size,), jnp.float32, -k, k)
    return params


if __name__ == "__main__":
    vocab_size = 64
    output_size = 64
    embedding_dim = 16
    hidden_dim = 32
    n_layers = 2
    batch = 2
    seq_len = 8

    key = jax.random.PRNGKey(0)
    k_par, k_tok = jax.random.split(key)

    params = init_params(k_par, vocab_size, output_size,
                         embedding_dim, hidden_dim, n_layers)

    x = jax.random.randint(k_tok, (batch, seq_len), 0, vocab_size, jnp.int32)
    # init_hidden(batch): zeros of shape (n_layers, B, H)
    hidden = (jnp.zeros((n_layers, batch, hidden_dim), jnp.float32),
              jnp.zeros((n_layers, batch, hidden_dim), jnp.float32))

    fwd = jax.jit(functools.partial(rnn_forward, params))
    out, (h_n, c_n) = fwd(x, hidden)
    jax.block_until_ready((out, h_n, c_n))

    assert out.shape == (batch, output_size)
    assert h_n.shape == (n_layers, batch, hidden_dim)
    assert c_n.shape == (n_layers, batch, hidden_dim)

    # Correctness check against a pure-JAX (f32) reference.  Tolerances account
    # for bf16 matmul operands (f32 accumulation) in the kernel.
    with jax.default_matmul_precision("float32"):
        ref_out, (ref_h, ref_c) = rnn_reference(params, x, hidden)
    np.testing.assert_allclose(np.asarray(out), np.asarray(ref_out),
                               rtol=2e-2, atol=2e-2)
    np.testing.assert_allclose(np.asarray(h_n), np.asarray(ref_h),
                               rtol=2e-2, atol=2e-2)
    np.testing.assert_allclose(np.asarray(c_n), np.asarray(ref_c),
                               rtol=2e-2, atol=2e-2)

    print("KERNEL_OK")
</pallas_src>

<mosaic_0001>
module attributes {stable_mosaic.version = 11 : i64} {
  func.func @kernel(%arg0: memref<16x16xbf16, #tpu.memory_space<vmem>>, %arg1: memref<16x128xbf16, #tpu.memory_space<vmem>>, %arg2: memref<32x128xbf16, #tpu.memory_space<vmem>>, %arg3: memref<1x128xf32, #tpu.memory_space<vmem>>, %arg4: memref<32x128xbf16, #tpu.memory_space<vmem>>, %arg5: memref<32x128xbf16, #tpu.memory_space<vmem>>, %arg6: memref<1x128xf32, #tpu.memory_space<vmem>>, %arg7: memref<32x64xbf16, #tpu.memory_space<vmem>>, %arg8: memref<1x64xf32, #tpu.memory_space<vmem>>, %arg9: memref<2x2x32xf32, #tpu.memory_space<vmem>>, %arg10: memref<2x2x32xf32, #tpu.memory_space<vmem>>, %arg11: memref<2x64xf32, #tpu.memory_space<vmem>>, %arg12: memref<2x2x32xf32, #tpu.memory_space<vmem>>, %arg13: memref<2x2x32xf32, #tpu.memory_space<vmem>>, %arg14: memref<16x128xf32, #tpu.memory_space<vmem>>, %arg15: memref<2x16x32xbf16, #tpu.memory_space<vmem>>) attributes {dimension_semantics = [], scalar_prefetch = 0 : i64, scratch_operands = 2 : i64, tpu.core_type = #tpu.core_type<tc>} {
    %c0 = arith.constant 0 : index
    %c0_0 = arith.constant 0 : index
    %0 = vector.load %arg0[%c0, %c0_0] : memref<16x16xbf16, #tpu.memory_space<vmem>>, vector<16x16xbf16>
    %c0_1 = arith.constant 0 : index
    %c0_2 = arith.constant 0 : index
    %1 = vector.load %arg1[%c0_1, %c0_2] : memref<16x128xbf16, #tpu.memory_space<vmem>>, vector<16x128xbf16>
    %c0_3 = arith.constant 0 : index
    %c0_4 = arith.constant 0 : index
    %2 = vector.load %arg2[%c0_3, %c0_4] : memref<32x128xbf16, #tpu.memory_space<vmem>>, vector<32x128xbf16>
    %c0_5 = arith.constant 0 : index
    %c0_6 = arith.constant 0 : index
    %3 = vector.load %arg3[%c0_5, %c0_6] : memref<1x128xf32, #tpu.memory_space<vmem>>, vector<1x128xf32>
    %cst = arith.constant dense<0.000000e+00> : vector<16x128xf32>
    %4 = tpu.matmul %0, %1, %cst {dimension_numbers = #tpu.dot_dimension_numbers<[1], [0], [0], [1], [0, 0, 1, 1], [], []>} : vector<16x16xbf16>, vector<16x128xbf16>, vector<16x128xf32> -> vector<16x128xf32>
    %5 = vector.broadcast %3 : vector<1x128xf32> to vector<16x128xf32>
    %6 = arith.addf %4, %5 : vector<16x128xf32>
    %c0_7 = arith.constant 0 : index
    %c0_8 = arith.constant 0 : index
    %7 = vector.load %arg14[%c0_7, %c0_8] : memref<16x128xf32, #tpu.memory_space<vmem>>, vector<16x128xf32>
    tpu.vector_store %arg14[%c0_7, %c0_8], %6 {strides = array<i32>} : memref<16x128xf32, #tpu.memory_space<vmem>>, vector<16x128xf32>,
    %c0_9 = arith.constant 0 : index
    %c0_10 = arith.constant 0 : index
    %c0_11 = arith.constant 0 : index
    %8 = vector.load %arg9[%c0_9, %c0_10, %c0_11] : memref<2x2x32xf32, #tpu.memory_space<vmem>>, vector<1x2x32xf32>
    %9 = vector.shape_cast %8 : vector<1x2x32xf32> to vector<2x32xf32>
    %c0_12 = arith.constant 0 : index
    %c0_13 = arith.constant 0 : index
    %c0_14 = arith.constant 0 : index
    %10 = vector.load %arg10[%c0_12, %c0_13, %c0_14] : memref<2x2x32xf32, #tpu.memory_space<vmem>>, vector<1x2x32xf32>
    %11 = vector.shape_cast %10 : vector<1x2x32xf32> to vector<2x32xf32>
    %c0_15 = arith.constant 0 : index
    %c0_16 = arith.constant 0 : index
    %12 = vector.load %arg14[%c0_15, %c0_16] : memref<16x128xf32, #tpu.memory_space<vmem>>, vector<2x128xf32>
    %13 = arith.truncf %9 : vector<2x32xf32> to vector<2x32xbf16>
    %cst_17 = arith.constant dense<0.000000e+00> : vector<2x128xf32>
    %14 = tpu.matmul %13, %2, %cst_17 {dimension_numbers = #tpu.dot_dimension_numbers<[1], [0], [0], [1], [0, 0, 1, 1], [], []>} : vector<2x32xbf16>, vector<32x128xbf16>, vector<2x128xf32> -> vector<2x128xf32>
    %15 = arith.addf %12, %14 : vector<2x128xf32>
    %16 = vector.extract_strided_slice %15 {offsets = [0, 0], sizes = [2, 96], strides = [1, 1]} : vector<2x128xf32> to vector<2x96xf32>
    %17 = arith.negf %16 : vector<2x96xf32>
    %18 = math.exp %17 : vector<2x96xf32>
    %cst_18 = arith.constant 1.000000e+00 : f32
    %19 = vector.broadcast %cst_18 : f32 to vector<2x96xf32>
    %20 = arith.addf %19, %18 : vector<2x96xf32>
    %21 = arith.divf %19, %20 : vector<2x96xf32>
    %22 = vector.extract_strided_slice %15 {offsets = [0, 96], sizes = [2, 32], strides = [1, 1]} : vector<2x128xf32> to vector<2x32xf32>
    %23 = math.tanh %22 : vector<2x32xf32>
    %24 = vector.extract_strided_slice %21 {offsets = [0, 0], sizes = [2, 32], strides = [1, 1]} : vector<2x96xf32> to vector<2x32xf32>
    %25 = vector.extract_strided_slice %21 {offsets = [0, 32], sizes = [2, 32], strides = [1, 1]} : vector<2x96xf32> to vector<2x32xf32>
    %26 = vector.extract_strided_slice %21 {offsets = [0, 64], sizes = [2, 32], strides = [1, 1]} : vector<2x96xf32> to vector<2x32xf32>
    %27 = arith.mulf %25, %11 : vector<2x32xf32>
    %28 = arith.mulf %24, %23 : vector<2x32xf32>
    %29 = arith.addf %27, %28 : vector<2x32xf32>
    %30 = math.tanh %29 : vector<2x32xf32>
    %31 = arith.mulf %26, %30 : vector<2x32xf32>
    %32 = arith.truncf %31 : vector<2x32xf32> to vector<2x32xbf16>
    %c0_19 = arith.constant 0 : index
    %c0_20 = arith.constant 0 : index
    %c0_21 = arith.constant 0 : index
    %33 = vector.load %arg15[%c0_19, %c0_20, %c0_21] : memref<2x16x32xbf16, #tpu.memory_space<vmem>>, vector<1x2x32xbf16>
    %34 = vector.shape_cast %33 : vector<1x2x32xbf16> to vector<2x32xbf16>
    %35 = vector.shape_cast %32 : vector<2x32xbf16> to vector<1x2x32xbf16>
    tpu.vector_store %arg15[%c0_19, %c0_20, %c0_21], %35 {strides = array<i32>} : memref<2x16x32xbf16, #tpu.memory_space<vmem>>, vector<1x2x32xbf16>,
    %c2 = arith.constant 2 : index
    %c0_22 = arith.constant 0 : index
    %36 = vector.load %arg14[%c2, %c0_22] : memref<16x128xf32, #tpu.memory_space<vmem>>, vector<2x128xf32>
    %37 = arith.truncf %31 : vector<2x32xf32> to vector<2x32xbf16>
    %cst_23 = arith.constant dense<0.000000e+00> : vector<2x128xf32>
    %38 = tpu.matmul %37, %2, %cst_23 {dimension_numbers = #tpu.dot_dimension_numbers<[1], [0], [0], [1], [0, 0, 1, 1], [], []>} : vector<2x32xbf16>, vector<32x128xbf16>, vector<2x128xf32> -> vector<2x128xf32>
    %39 = arith.addf %36, %38 : vector<2x128xf32>
    %40 = vector.extract_strided_slice %39 {offsets = [0, 0], sizes = [2, 96], strides = [1, 1]} : vector<2x128xf32> to vector<2x96xf32>
    %41 = arith.negf %40 : vector<2x96xf32>
    %42 = math.exp %41 : vector<2x96xf32>
    %cst_24 = arith.constant 1.000000e+00 : f32
    %43 = vector.broadcast %cst_24 : f32 to vector<2x96xf32>
    %44 = arith.addf %43, %42 : vector<2x96xf32>
    %45 = arith.divf %43, %44 : vector<2x96xf32>
    %46 = vector.extract_strided_slice %39 {offsets = [0, 96], sizes = [2, 32], strides = [1, 1]} : vector<2x128xf32> to vector<2x32xf32>
    %47 = math.tanh %46 : vector<2x32xf32>
    %48 = vector.extract_strided_slice %45 {offsets = [0, 0], sizes = [2, 32], strides = [1, 1]} : vector<2x96xf32> to vector<2x32xf32>
    %49 = vector.extract_strided_slice %45 {offsets = [0, 32], sizes = [2, 32], strides = [1, 1]} : vector<2x96xf32> to vector<2x32xf32>
    %50 = vector.extract_strided_slice %45 {offsets = [0, 64], sizes = [2, 32], strides = [1, 1]} : vector<2x96xf32> to vector<2x32xf32>
    %51 = arith.mulf %49, %29 : vector<2x32xf32>
    %52 = arith.mulf %48, %47 : vector<2x32xf32>
    %53 = arith.addf %51, %52 : vector<2x32xf32>
    %54 = math.tanh %53 : vector<2x32xf32>
    %55 = arith.mulf %50, %54 : vector<2x32xf32>
    %56 = arith.truncf %55 : vector<2x32xf32> to vector<2x32xbf16>
    %c0_25 = arith.constant 0 : index
    %c2_26 = arith.constant 2 : index
    %c0_27 = arith.constant 0 : index
    %57 = vector.load %arg15[%c0_25, %c2_26, %c0_27] : memref<2x16x32xbf16, #tpu.memory_space<vmem>>, vector<1x2x32xbf16>
    %58 = vector.shape_cast %57 : vector<1x2x32xbf16> to vector<2x32xbf16>
    %59 = vector.shape_cast %56 : vector<2x32xbf16> to vector<1x2x32xbf16>
    tpu.vector_store %arg15[%c0_25, %c2_26, %c0_27], %59 {strides = array<i32>} : memref<2x16x32xbf16, #tpu.memory_space<vmem>>, vector<1x2x32xbf16>,
    %c4 = arith.constant 4 : index
    %c0_28 = arith.constant 0 : index
    %60 = vector.load %arg14[%c4, %c0_28] : memref<16x128xf32, #tpu.memory_space<vmem>>, vector<2x128xf32>
    %61 = arith.truncf %55 : vector<2x32xf32> to vector<2x32xbf16>
    %cst_29 = arith.constant dense<0.000000e+00> : vector<2x128xf32>
    %62 = tpu.matmul %61, %2, %cst_29 {dimension_numbers = #tpu.dot_dimension_numbers<[1], [0], [0], [1], [0, 0, 1, 1], [], []>} : vector<2x32xbf16>, vector<32x128xbf16>, vector<2x128xf32> -> vector<2x128xf32>
    %63 = arith.addf %60, %62 : vector<2x128xf32>
    %64 = vector.extract_strided_slice %63 {offsets = [0, 0], sizes = [2, 96], strides = [1, 1]} : vector<2x128xf32> to vector<2x96xf32>
    %65 = arith.negf %64 : vector<2x96xf32>
    %66 = math.exp %65 : vector<2x96xf32>
    %cst_30 = arith.constant 1.000000e+00 : f32
    %67 = vector.broadcast %cst_30 : f32 to vector<2x96xf32>
    %68 = arith.addf %67, %66 : vector<2x96xf32>
    %69 = arith.divf %67, %68 : vector<2x96xf32>
    %70 = vector.extract_strided_slice %63 {offsets = [0, 96], sizes = [2, 32], strides = [1, 1]} : vector<2x128xf32> to vector<2x32xf32>
    %71 = math.tanh %70 : vector<2x32xf32>
    %72 = vector.extract_strided_slice %69 {offsets = [0, 0], sizes = [2, 32], strides = [1, 1]} : vector<2x96xf32> to vector<2x32xf32>
    %73 = vector.extract_strided_slice %69 {offsets = [0, 32], sizes = [2, 32], strides = [1, 1]} : vector<2x96xf32> to vector<2x32xf32>
    %74 = vector.extract_strided_slice %69 {offsets = [0, 64], sizes = [2, 32], strides = [1, 1]} : vector<2x96xf32> to vector<2x32xf32>
    %75 = arith.mulf %73, %53 : vector<2x32xf32>
    %76 = arith.mulf %72, %71 : vector<2x32xf32>
    %77 = arith.addf %75, %76 : vector<2x32xf32>
    %78 = math.tanh %77 : vector<2x32xf32>
    %79 = arith.mulf %74, %78 : vector<2x32xf32>
    %80 = arith.truncf %79 : vector<2x32xf32> to vector<2x32xbf16>
    %c0_31 = arith.constant 0 : index
    %c4_32 = arith.constant 4 : index
    %c0_33 = arith.constant 0 : index
    %81 = vector.load %arg15[%c0_31, %c4_32, %c0_33] : memref<2x16x32xbf16, #tpu.memory_space<vmem>>, vector<1x2x32xbf16>
    %82 = vector.shape_cast %81 : vector<1x2x32xbf16> to vector<2x32xbf16>
    %83 = vector.shape_cast %80 : vector<2x32xbf16> to vector<1x2x32xbf16>
    tpu.vector_store %arg15[%c0_31, %c4_32, %c0_33], %83 {strides = array<i32>} : memref<2x16x32xbf16, #tpu.memory_space<vmem>>, vector<1x2x32xbf16>,
    %c6 = arith.constant 6 : index
    %c0_34 = arith.constant 0 : index
    %84 = vector.load %arg14[%c6, %c0_34] : memref<16x128xf32, #tpu.memory_space<vmem>>, vector<2x128xf32>
    %85 = arith.truncf %79 : vector<2x32xf32> to vector<2x32xbf16>
    %cst_35 = arith.constant dense<0.000000e+00> : vector<2x128xf32>
    %86 = tpu.matmul %85, %2, %cst_35 {dimension_numbers = #tpu.dot_dimension_numbers<[1], [0], [0], [1], [0, 0, 1, 1], [], []>} : vector<2x32xbf16>, vector<32x128xbf16>, vector<2x128xf32> -> vector<2x128xf32>
    %87 = arith.addf %84, %86 : vector<2x128xf32>
    %88 = vector.extract_strided_slice %87 {offsets = [0, 0], sizes = [2, 96], strides = [1, 1]} : vector<2x128xf32> to vector<2x96xf32>
    %89 = arith.negf %88 : vector<2x96xf32>
    %90 = math.exp %89 : vector<2x96xf32>
    %cst_36 = arith.constant 1.000000e+00 : f32
    %91 = vector.broadcast %cst_36 : f32 to vector<2x96xf32>
    %92 = arith.addf %91, %90 : vector<2x96xf32>
    %93 = arith.divf %91, %92 : vector<2x96xf32>
    %94 = vector.extract_strided_slice %87 {offsets = [0, 96], sizes = [2, 32], strides = [1, 1]} : vector<2x128xf32> to vector<2x32xf32>
    %95 = math.tanh %94 : vector<2x32xf32>
    %96 = vector.extract_strided_slice %93 {offsets = [0, 0], sizes = [2, 32], strides = [1, 1]} : vector<2x96xf32> to vector<2x32xf32>
    %97 = vector.extract_strided_slice %93 {offsets = [0, 32], sizes = [2, 32], strides = [1, 1]} : vector<2x96xf32> to vector<2x32xf32>
    %98 = vector.extract_strided_slice %93 {offsets = [0, 64], sizes = [2, 32], strides = [1, 1]} : vector<2x96xf32> to vector<2x32xf32>
    %99 = arith.mulf %97, %77 : vector<2x32xf32>
    %100 = arith.mulf %96, %95 : vector<2x32xf32>
    %101 = arith.addf %99, %100 : vector<2x32xf32>
    %102 = math.tanh %101 : vector<2x32xf32>
    %103 = arith.mulf %98, %102 : vector<2x32xf32>
    %104 = arith.truncf %103 : vector<2x32xf32> to vector<2x32xbf16>
    %c0_37 = arith.constant 0 : index
    %c6_38 = arith.constant 6 : index
    %c0_39 = arith.constant 0 : index
    %105 = vector.load %arg15[%c0_37, %c6_38, %c0_39] : memref<2x16x32xbf16, #tpu.memory_space<vmem>>, vector<1x2x32xbf16>
    %106 = vector.shape_cast %105 : vector<1x2x32xbf16> to vector<2x32xbf16>
    %107 = vector.shape_cast %104 : vector<2x32xbf16> to vector<1x2x32xbf16>
    tpu.vector_store %arg15[%c0_37, %c6_38, %c0_39], %107 {strides = array<i32>} : memref<2x16x32xbf16, #tpu.memory_space<vmem>>, vector<1x2x32xbf16>,
    %c8 = arith.constant 8 : index
    %c0_40 = arith.constant 0 : index
    %108 = vector.load %arg14[%c8, %c0_40] : memref<16x128xf32, #tpu.memory_space<vmem>>, vector<2x128xf32>
    %109 = arith.truncf %103 : vector<2x32xf32> to vector<2x32xbf16>
    %cst_41 = arith.constant dense<0.000000e+00> : vector<2x128xf32>
    %110 = tpu.matmul %109, %2, %cst_41 {dimension_numbers = #tpu.dot_dimension_numbers<[1], [0], [0], [1], [0, 0, 1, 1], [], []>} : vector<2x32xbf16>, vector<32x128xbf16>, vector<2x128xf32> -> vector<2x128xf32>
    %111 = arith.addf %108, %110 : vector<2x128xf32>
    %112 = vector.extract_strided_slice %111 {offsets = [0, 0], sizes = [2, 96], strides = [1, 1]} : vector<2x128xf32> to vector<2x96xf32>
    %113 = arith.negf %112 : vector<2x96xf32>
    %114 = math.exp %113 : vector<2x96xf32>
    %cst_42 = arith.constant 1.000000e+00 : f32
    %115 = vector.broadcast %cst_42 : f32 to vector<2x96xf32>
    %116 = arith.addf %115, %114 : vector<2x96xf32>
    %117 = arith.divf %115, %116 : vector<2x96xf32>
    %118 = vector.extract_strided_slice %111 {offsets = [0, 96], sizes = [2, 32], strides = [1, 1]} : vector<2x128xf32> to vector<2x32xf32>
    %119 = math.tanh %118 : vector<2x32xf32>
    %120 = vector.extract_strided_slice %117 {offsets = [0, 0], sizes = [2, 32], strides = [1, 1]} : vector<2x96xf32> to vector<2x32xf32>
    %121 = vector.extract_strided_slice %117 {offsets = [0, 32], sizes = [2, 32], strides = [1, 1]} : vector<2x96xf32> to vector<2x32xf32>
    %122 = vector.extract_strided_slice %117 {offsets = [0, 64], sizes = [2, 32], strides = [1, 1]} : vector<2x96xf32> to vector<2x32xf32>
    %123 = arith.mulf %121, %101 : vector<2x32xf32>
    %124 = arith.mulf %120, %119 : vector<2x32xf32>
    %125 = arith.addf %123, %124 : vector<2x32xf32>
    %126 = math.tanh %125 : vector<2x32xf32>
    %127 = arith.mulf %122, %126 : vector<2x32xf32>
    %128 = arith.truncf %127 : vector<2x32xf32> to vector<2x32xbf16>
    %c0_43 = arith.constant 0 : index
    %c8_44 = arith.constant 8 : index
    %c0_45 = arith.constant 0 : index
    %129 = vector.load %arg15[%c0_43, %c8_44, %c0_45] : memref<2x16x32xbf16, #tpu.memory_space<vmem>>, vector<1x2x32xbf16>
    %130 = vector.shape_cast %129 : vector<1x2x32xbf16> to vector<2x32xbf16>
    %131 = vector.shape_cast %128 : vector<2x32xbf16> to vector<1x2x32xbf16>
    tpu.vector_store %arg15[%c0_43, %c8_44, %c0_45], %131 {strides = array<i32>} : memref<2x16x32xbf16, #tpu.memory_space<vmem>>, vector<1x2x32xbf16>,
    %c10 = arith.constant 10 : index
    %c0_46 = arith.constant 0 : index
    %132 = vector.load %arg14[%c10, %c0_46] : memref<16x128xf32, #tpu.memory_space<vmem>>, vector<2x128xf32>
    %133 = arith.truncf %127 : vector<2x32xf32> to vector<2x32xbf16>
    %cst_47 = arith.constant dense<0.000000e+00> : vector<2x128xf32>
    %134 = tpu.matmul %133, %2, %cst_47 {dimension_numbers = #tpu.dot_dimension_numbers<[1], [0], [0], [1], [0, 0, 1, 1], [], []>} : vector<2x32xbf16>, vector<32x128xbf16>, vector<2x128xf32> -> vector<2x128xf32>
    %135 = arith.addf %132, %134 : vector<2x128xf32>
    %136 = vector.extract_strided_slice %135 {offsets = [0, 0], sizes = [2, 96], strides = [1, 1]} : vector<2x128xf32> to vector<2x96xf32>
    %137 = arith.negf %136 : vector<2x96xf32>
    %138 = math.exp %137 : vector<2x96xf32>
    %cst_48 = arith.constant 1.000000e+00 : f32
    %139 = vector.broadcast %cst_48 : f32 to vector<2x96xf32>
    %140 = arith.addf %139, %138 : vector<2x96xf32>
    %141 = arith.divf %139, %140 : vector<2x96xf32>
    %142 = vector.extract_strided_slice %135 {offsets = [0, 96], sizes = [2, 32], strides = [1, 1]} : vector<2x128xf32> to vector<2x32xf32>
    %143 = math.tanh %142 : vector<2x32xf32>
    %144 = vector.extract_strided_slice %141 {offsets = [0, 0], sizes = [2, 32], strides = [1, 1]} : vector<2x96xf32> to vector<2x32xf32>
    %145 = vector.extract_strided_slice %141 {offsets = [0, 32], sizes = [2, 32], strides = [1, 1]} : vector<2x96xf32> to vector<2x32xf32>
    %146 = vector.extract_strided_slice %141 {offsets = [0, 64], sizes = [2, 32], strides = [1, 1]} : vector<2x96xf32> to vector<2x32xf32>
    %147 = arith.mulf %145, %125 : vector<2x32xf32>
    %148 = arith.mulf %144, %143 : vector<2x32xf32>
    %149 = arith.addf %147, %148 : vector<2x32xf32>
    %150 = math.tanh %149 : vector<2x32xf32>
    %151 = arith.mulf %146, %150 : vector<2x32xf32>
    %152 = arith.truncf %151 : vector<2x32xf32> to vector<2x32xbf16>
    %c0_49 = arith.constant 0 : index
    %c10_50 = arith.constant 10 : index
    %c0_51 = arith.constant 0 : index
    %153 = vector.load %arg15[%c0_49, %c10_50, %c0_51] : memref<2x16x32xbf16, #tpu.memory_space<vmem>>, vector<1x2x32xbf16>
    %154 = vector.shape_cast %153 : vector<1x2x32xbf16> to vector<2x32xbf16>
    %155 = vector.shape_cast %152 : vector<2x32xbf16> to vector<1x2x32xbf16>
    tpu.vector_store %arg15[%c0_49, %c10_50, %c0_51], %155 {strides = array<i32>} : memref<2x16x32xbf16, #tpu.memory_space<vmem>>, vector<1x2x32xbf16>,
    %c12 = arith.constant 12 : index
    %c0_52 = arith.constant 0 : index
    %156 = vector.load %arg14[%c12, %c0_52] : memref<16x128xf32, #tpu.memory_space<vmem>>, vector<2x128xf32>
    %157 = arith.truncf %151 : vector<2x32xf32> to vector<2x32xbf16>
    %cst_53 = arith.constant dense<0.000000e+00> : vector<2x128xf32>
    %158 = tpu.matmul %157, %2, %cst_53 {dimension_numbers = #tpu.dot_dimension_numbers<[1], [0], [0], [1], [0, 0, 1, 1], [], []>} : vector<2x32xbf16>, vector<32x128xbf16>, vector<2x128xf32> -> vector<2x128xf32>
    %159 = arith.addf %156, %158 : vector<2x128xf32>
    %160 = vector.extract_strided_slice %159 {offsets = [0, 0], sizes = [2, 96], strides = [1, 1]} : vector<2x128xf32> to vector<2x96xf32>
    %161 = arith.negf %160 : vector<2x96xf32>
    %162 = math.exp %161 : vector<2x96xf32>
    %cst_54 = arith.constant 1.000000e+00 : f32
    %163 = vector.broadcast %cst_54 : f32 to vector<2x96xf32>
    %164 = arith.addf %163, %162 : vector<2x96xf32>
    %165 = arith.divf %163, %164 : vector<2x96xf32>
    %166 = vector.extract_strided_slice %159 {offsets = [0, 96], sizes = [2, 32], strides = [1, 1]} : vector<2x128xf32> to vector<2x32xf32>
    %167 = math.tanh %166 : vector<2x32xf32>
    %168 = vector.extract_strided_slice %165 {offsets = [0, 0], sizes = [2, 32], strides = [1, 1]} : vector<2x96xf32> to vector<2x32xf32>
    %169 = vector.extract_strided_slice %165 {offsets = [0, 32], sizes = [2, 32], strides = [1, 1]} : vector<2x96xf32> to vector<2x32xf32>
    %170 = vector.extract_strided_slice %165 {offsets = [0, 64], sizes = [2, 32], strides = [1, 1]} : vector<2x96xf32> to vector<2x32xf32>
    %171 = arith.mulf %169, %149 : vector<2x32xf32>
    %172 = arith.mulf %168, %167 : vector<2x32xf32>
    %173 = arith.addf %171, %172 : vector<2x32xf32>
    %174 = math.tanh %173 : vector<2x32xf32>
    %175 = arith.mulf %170, %174 : vector<2x32xf32>
    %176 = arith.truncf %175 : vector<2x32xf32> to vector<2x32xbf16>
    %c0_55 = arith.constant 0 : index
    %c12_56 = arith.constant 12 : index
    %c0_57 = arith.constant 0 : index
    %177 = vector.load %arg15[%c0_55, %c12_56, %c0_57] : memref<2x16x32xbf16, #tpu.memory_space<vmem>>, vector<1x2x32xbf16>
    %178 = vector.shape_cast %177 : vector<1x2x32xbf16> to vector<2x32xbf16>
    %179 = vector.shape_cast %176 : vector<2x32xbf16> to vector<1x2x32xbf16>
    tpu.vector_store %arg15[%c0_55, %c12_56, %c0_57], %179 {strides = array<i32>} : memref<2x16x32xbf16, #tpu.memory_space<vmem>>, vector<1x2x32xbf16>,
    %c14 = arith.constant 14 : index
    %c0_58 = arith.constant 0 : index
    %180 = vector.load %arg14[%c14, %c0_58] : memref<16x128xf32, #tpu.memory_space<vmem>>, vector<2x128xf32>
    %181 = arith.truncf %175 : vector<2x32xf32> to vector<2x32xbf16>
    %cst_59 = arith.constant dense<0.000000e+00> : vector<2x128xf32>
    %182 = tpu.matmul %181, %2, %cst_59 {dimension_numbers = #tpu.dot_dimension_numbers<[1], [0], [0], [1], [0, 0, 1, 1], [], []>} : vector<2x32xbf16>, vector<32x128xbf16>, vector<2x128xf32> -> vector<2x128xf32>
    %183 = arith.addf %180, %182 : vector<2x128xf32>
    %184 = vector.extract_strided_slice %183 {offsets = [0, 0], sizes = [2, 96], strides = [1, 1]} : vector<2x128xf32> to vector<2x96xf32>
    %185 = arith.negf %184 : vector<2x96xf32>
    %186 = math.exp %185 : vector<2x96xf32>
    %cst_60 = arith.constant 1.000000e+00 : f32
    %187 = vector.broadcast %cst_60 : f32 to vector<2x96xf32>
    %188 = arith.addf %187, %186 : vector<2x96xf32>
    %189 = arith.divf %187, %188 : vector<2x96xf32>
    %190 = vector.extract_strided_slice %183 {offsets = [0, 96], sizes = [2, 32], strides = [1, 1]} : vector<2x128xf32> to vector<2x32xf32>
    %191 = math.tanh %190 : vector<2x32xf32>
    %192 = vector.extract_strided_slice %189 {offsets = [0, 0], sizes = [2, 32], strides = [1, 1]} : vector<2x96xf32> to vector<2x32xf32>
    %193 = vector.extract_strided_slice %189 {offsets = [0, 32], sizes = [2, 32], strides = [1, 1]} : vector<2x96xf32> to vector<2x32xf32>
    %194 = vector.extract_strided_slice %189 {offsets = [0, 64], sizes = [2, 32], strides = [1, 1]} : vector<2x96xf32> to vector<2x32xf32>
    %195 = arith.mulf %193, %173 : vector<2x32xf32>
    %196 = arith.mulf %192, %191 : vector<2x32xf32>
    %197 = arith.addf %195, %196 : vector<2x32xf32>
    %198 = math.tanh %197 : vector<2x32xf32>
    %199 = arith.mulf %194, %198 : vector<2x32xf32>
    %200 = arith.truncf %199 : vector<2x32xf32> to vector<2x32xbf16>
    %c0_61 = arith.constant 0 : index
    %c14_62 = arith.constant 14 : index
    %c0_63 = arith.constant 0 : index
    %201 = vector.load %arg15[%c0_61, %c14_62, %c0_63] : memref<2x16x32xbf16, #tpu.memory_space<vmem>>, vector<1x2x32xbf16>
    %202 = vector.shape_cast %201 : vector<1x2x32xbf16> to vector<2x32xbf16>
    %203 = vector.shape_cast %200 : vector<2x32xbf16> to vector<1x2x32xbf16>
    tpu.vector_store %arg15[%c0_61, %c14_62, %c0_63], %203 {strides = array<i32>} : memref<2x16x32xbf16, #tpu.memory_space<vmem>>, vector<1x2x32xbf16>,
    %c0_64 = arith.constant 0 : index
    %c0_65 = arith.constant 0 : index
    %c0_66 = arith.constant 0 : index
    %204 = vector.load %arg12[%c0_64, %c0_65, %c0_66] : memref<2x2x32xf32, #tpu.memory_space<vmem>>, vector<1x2x32xf32>
    %205 = vector.shape_cast %204 : vector<1x2x32xf32> to vector<2x32xf32>
    %206 = vector.shape_cast %199 : vector<2x32xf32> to vector<1x2x32xf32>
    tpu.vector_store %arg12[%c0_64, %c0_65, %c0_66], %206 {strides = array<i32>} : memref<2x2x32xf32, #tpu.memory_space<vmem>>, vector<1x2x32xf32>,
    %c0_67 = arith.constant 0 : index
    %c0_68 = arith.constant 0 : index
    %c0_69 = arith.constant 0 : index
    %207 = vector.load %arg13[%c0_67, %c0_68, %c0_69] : memref<2x2x32xf32, #tpu.memory_space<vmem>>, vector<1x2x32xf32>
    %208 = vector.shape_cast %207 : vector<1x2x32xf32> to vector<2x32xf32>
    %209 = vector.shape_cast %197 : vector<2x32xf32> to vector<1x2x32xf32>
    tpu.vector_store %arg13[%c0_67, %c0_68, %c0_69], %209 {strides = array<i32>} : memref<2x2x32xf32, #tpu.memory_space<vmem>>, vector<1x2x32xf32>,
    %c0_70 = arith.constant 0 : index
    %c0_71 = arith.constant 0 : index
    %c0_72 = arith.constant 0 : index
    %210 = vector.load %arg15[%c0_70, %c0_71, %c0_72] : memref<2x16x32xbf16, #tpu.memory_space<vmem>>, vector<1x16x32xbf16>
    %211 = vector.shape_cast %210 : vector<1x16x32xbf16> to vector<16x32xbf16>
    %c0_73 = arith.constant 0 : index
    %c0_74 = arith.constant 0 : index
    %212 = vector.load %arg4[%c0_73, %c0_74] : memref<32x128xbf16, #tpu.memory_space<vmem>>, vector<32x128xbf16>
    %c0_75 = arith.constant 0 : index
    %c0_76 = arith.constant 0 : index
    %213 = vector.load %arg5[%c0_75, %c0_76] : memref<32x128xbf16, #tpu.memory_space<vmem>>, vector<32x128xbf16>
    %c0_77 = arith.constant 0 : index
    %c0_78 = arith.constant 0 : index
    %214 = vector.load %arg6[%c0_77, %c0_78] : memref<1x128xf32, #tpu.memory_space<vmem>>, vector<1x128xf32>
    %cst_79 = arith.constant dense<0.000000e+00> : vector<16x128xf32>
    %215 = tpu.matmul %211, %212, %cst_79 {dimension_numbers = #tpu.dot_dimension_numbers<[1], [0], [0], [1], [0, 0, 1, 1], [], []>} : vector<16x32xbf16>, vector<32x128xbf16>, vector<16x128xf32> -> vector<16x128xf32>
    %216 = vector.broadcast %214 : vector<1x128xf32> to vector<16x128xf32>
    %217 = arith.addf %215, %216 : vector<16x128xf32>
    %c0_80 = arith.constant 0 : index
    %c0_81 = arith.constant 0 : index
    %218 = vector.load %arg14[%c0_80, %c0_81] : memref<16x128xf32, #tpu.memory_space<vmem>>, vector<16x128xf32>
    tpu.vector_store %arg14[%c0_80, %c0_81], %217 {strides = array<i32>} : memref<16x128xf32, #tpu.memory_space<vmem>>, vector<16x128xf32>,
    %c1 = arith.constant 1 : index
    %c0_82 = arith.constant 0 : index
    %c0_83 = arith.constant 0 : index
    %219 = vector.load %arg9[%c1, %c0_82, %c0_83] : memref<2x2x32xf32, #tpu.memory_space<vmem>>, vector<1x2x32xf32>
    %220 = vector.shape_cast %219 : vector<1x2x32xf32> to vector<2x32xf32>
    %c1_84 = arith.constant 1 : index
    %c0_85 = arith.constant 0 : index
    %c0_86 = arith.constant 0 : index
    %221 = vector.load %arg10[%c1_84, %c0_85, %c0_86] : memref<2x2x32xf32, #tpu.memory_space<vmem>>, vector<1x2x32xf32>
    %222 = vector.shape_cast %221 : vector<1x2x32xf32> to vector<2x32xf32>
    %c0_87 = arith.constant 0 : index
    %c0_88 = arith.constant 0 : index
    %223 = vector.load %arg14[%c0_87, %c0_88] : memref<16x128xf32, #tpu.memory_space<vmem>>, vector<2x128xf32>
    %224 = arith.truncf %220 : vector<2x32xf32> to vector<2x32xbf16>
    %cst_89 = arith.constant dense<0.000000e+00> : vector<2x128xf32>
    %225 = tpu.matmul %224, %213, %cst_89 {dimension_numbers = #tpu.dot_dimension_numbers<[1], [0], [0], [1], [0, 0, 1, 1], [], []>} : vector<2x32xbf16>, vector<32x128xbf16>, vector<2x128xf32> -> vector<2x128xf32>
    %226 = arith.addf %223, %225 : vector<2x128xf32>
    %227 = vector.extract_strided_slice %226 {offsets = [0, 0], sizes = [2, 96], strides = [1, 1]} : vector<2x128xf32> to vector<2x96xf32>
    %228 = arith.negf %227 : vector<2x96xf32>
    %229 = math.exp %228 : vector<2x96xf32>
    %cst_90 = arith.constant 1.000000e+00 : f32
    %230 = vector.broadcast %cst_90 : f32 to vector<2x96xf32>
    %231 = arith.addf %230, %229 : vector<2x96xf32>
    %232 = arith.divf %230, %231 : vector<2x96xf32>
    %233 = vector.extract_strided_slice %226 {offsets = [0, 96], sizes = [2, 32], strides = [1, 1]} : vector<2x128xf32> to vector<2x32xf32>
    %234 = math.tanh %233 : vector<2x32xf32>
    %235 = vector.extract_strided_slice %232 {offsets = [0, 0], sizes = [2, 32], strides = [1, 1]} : vector<2x96xf32> to vector<2x32xf32>
    %236 = vector.extract_strided_slice %232 {offsets = [0, 32], sizes = [2, 32], strides = [1, 1]} : vector<2x96xf32> to vector<2x32xf32>
    %237 = vector.extract_strided_slice %232 {offsets = [0, 64], sizes = [2, 32], strides = [1, 1]} : vector<2x96xf32> to vector<2x32xf32>
    %238 = arith.mulf %236, %222 : vector<2x32xf32>
    %239 = arith.mulf %235, %234 : vector<2x32xf32>
    %240 = arith.addf %238, %239 : vector<2x32xf32>
    %241 = math.tanh %240 : vector<2x32xf32>
    %242 = arith.mulf %237, %241 : vector<2x32xf32>
    %c2_91 = arith.constant 2 : index
    %c0_92 = arith.constant 0 : index
    %243 = vector.load %arg14[%c2_91, %c0_92] : memref<16x128xf32, #tpu.memory_space<vmem>>, vector<2x128xf32>
    %244 = arith.truncf %242 : vector<2x32xf32> to vector<2x32xbf16>
    %cst_93 = arith.constant dense<0.000000e+00> : vector<2x128xf32>
    %245 = tpu.matmul %244, %213, %cst_93 {dimension_numbers = #tpu.dot_dimension_numbers<[1], [0], [0], [1], [0, 0, 1, 1], [], []>} : vector<2x32xbf16>, vector<32x128xbf16>, vector<2x128xf32> -> vector<2x128xf32>
    %246 = arith.addf %243, %245 : vector<2x128xf32>
    %247 = vector.extract_strided_slice %246 {offsets = [0, 0], sizes = [2, 96], strides = [1, 1]} : vector<2x128xf32> to vector<2x96xf32>
    %248 = arith.negf %247 : vector<2x96xf32>
    %249 = math.exp %248 : vector<2x96xf32>
    %cst_94 = arith.constant 1.000000e+00 : f32
    %250 = vector.broadcast %cst_94 : f32 to vector<2x96xf32>
    %251 = arith.addf %250, %249 : vector<2x96xf32>
    %252 = arith.divf %250, %251 : vector<2x96xf32>
    %253 = vector.extract_strided_slice %246 {offsets = [0, 96], sizes = [2, 32], strides = [1, 1]} : vector<2x128xf32> to vector<2x32xf32>
    %254 = math.tanh %253 : vector<2x32xf32>
    %255 = vector.extract_strided_slice %252 {offsets = [0, 0], sizes = [2, 32], strides = [1, 1]} : vector<2x96xf32> to vector<2x32xf32>
    %256 = vector.extract_strided_slice %252 {offsets = [0, 32], sizes = [2, 32], strides = [1, 1]} : vector<2x96xf32> to vector<2x32xf32>
    %257 = vector.extract_strided_slice %252 {offsets = [0, 64], sizes = [2, 32], strides = [1, 1]} : vector<2x96xf32> to vector<2x32xf32>
    %258 = arith.mulf %256, %240 : vector<2x32xf32>
    %259 = arith.mulf %255, %254 : vector<2x32xf32>
    %260 = arith.addf %258, %259 : vector<2x32xf32>
    %261 = math.tanh %260 : vector<2x32xf32>
    %262 = arith.mulf %257, %261 : vector<2x32xf32>
    %c4_95 = arith.constant 4 : index
    %c0_96 = arith.constant 0 : index
    %263 = vector.load %arg14[%c4_95, %c0_96] : memref<16x128xf32, #tpu.memory_space<vmem>>, vector<2x128xf32>
    %264 = arith.truncf %262 : vector<2x32xf32> to vector<2x32xbf16>
    %cst_97 = arith.constant dense<0.000000e+00> : vector<2x128xf32>
    %265 = tpu.matmul %264, %213, %cst_97 {dimension_numbers = #tpu.dot_dimension_numbers<[1], [0], [0], [1], [0, 0, 1, 1], [], []>} : vector<2x32xbf16>, vector<32x128xbf16>, vector<2x128xf32> -> vector<2x128xf32>
    %266 = arith.addf %263, %265 : vector<2x128xf32>
    %267 = vector.extract_strided_slice %266 {offsets = [0, 0], sizes = [2, 96], strides = [1, 1]} : vector<2x128xf32> to vector<2x96xf32>
    %268 = arith.negf %267 : vector<2x96xf32>
    %269 = math.exp %268 : vector<2x96xf32>
    %cst_98 = arith.constant 1.000000e+00 : f32
    %270 = vector.broadcast %cst_98 : f32 to vector<2x96xf32>
    %271 = arith.addf %270, %269 : vector<2x96xf32>
    %272 = arith.divf %270, %271 : vector<2x96xf32>
    %273 = vector.extract_strided_slice %266 {offsets = [0, 96], sizes = [2, 32], strides = [1, 1]} : vector<2x128xf32> to vector<2x32xf32>
    %274 = math.tanh %273 : vector<2x32xf32>
    %275 = vector.extract_strided_slice %272 {offsets = [0, 0], sizes = [2, 32], strides = [1, 1]} : vector<2x96xf32> to vector<2x32xf32>
    %276 = vector.extract_strided_slice %272 {offsets = [0, 32], sizes = [2, 32], strides = [1, 1]} : vector<2x96xf32> to vector<2x32xf32>
    %277 = vector.extract_strided_slice %272 {offsets = [0, 64], sizes = [2, 32], strides = [1, 1]} : vector<2x96xf32> to vector<2x32xf32>
    %278 = arith.mulf %276, %260 : vector<2x32xf32>
    %279 = arith.mulf %275, %274 : vector<2x32xf32>
    %280 = arith.addf %278, %279 : vector<2x32xf32>
    %281 = math.tanh %280 : vector<2x32xf32>
    %282 = arith.mulf %277, %281 : vector<2x32xf32>
    %c6_99 = arith.constant 6 : index
    %c0_100 = arith.constant 0 : index
    %283 = vector.load %arg14[%c6_99, %c0_100] : memref<16x128xf32, #tpu.memory_space<vmem>>, vector<2x128xf32>
    %284 = arith.truncf %282 : vector<2x32xf32> to vector<2x32xbf16>
    %cst_101 = arith.constant dense<0.000000e+00> : vector<2x128xf32>
    %285 = tpu.matmul %284, %213, %cst_101 {dimension_numbers = #tpu.dot_dimension_numbers<[1], [0], [0], [1], [0, 0, 1, 1], [], []>} : vector<2x32xbf16>, vector<32x128xbf16>, vector<2x128xf32> -> vector<2x128xf32>
    %286 = arith.addf %283, %285 : vector<2x128xf32>
    %287 = vector.extract_strided_slice %286 {offsets = [0, 0], sizes = [2, 96], strides = [1, 1]} : vector<2x128xf32> to vector<2x96xf32>
    %288 = arith.negf %287 : vector<2x96xf32>
    %289 = math.exp %288 : vector<2x96xf32>
    %cst_102 = arith.constant 1.000000e+00 : f32
    %290 = vector.broadcast %cst_102 : f32 to vector<2x96xf32>
    %291 = arith.addf %290, %289 : vector<2x96xf32>
    %292 = arith.divf %290, %291 : vector<2x96xf32>
    %293 = vector.extract_strided_slice %286 {offsets = [0, 96], sizes = [2, 32], strides = [1, 1]} : vector<2x128xf32> to vector<2x32xf32>
    %294 = math.tanh %293 : vector<2x32xf32>
    %295 = vector.extract_strided_slice %292 {offsets = [0, 0], sizes = [2, 32], strides = [1, 1]} : vector<2x96xf32> to vector<2x32xf32>
    %296 = vector.extract_strided_slice %292 {offsets = [0, 32], sizes = [2, 32], strides = [1, 1]} : vector<2x96xf32> to vector<2x32xf32>
    %297 = vector.extract_strided_slice %292 {offsets = [0, 64], sizes = [2, 32], strides = [1, 1]} : vector<2x96xf32> to vector<2x32xf32>
    %298 = arith.mulf %296, %280 : vector<2x32xf32>
    %299 = arith.mulf %295, %294 : vector<2x32xf32>
    %300 = arith.addf %298, %299 : vector<2x32xf32>
    %301 = math.tanh %300 : vector<2x32xf32>
    %302 = arith.mulf %297, %301 : vector<2x32xf32>
    %c8_103 = arith.constant 8 : index
    %c0_104 = arith.constant 0 : index
    %303 = vector.load %arg14[%c8_103, %c0_104] : memref<16x128xf32, #tpu.memory_space<vmem>>, vector<2x128xf32>
    %304 = arith.truncf %302 : vector<2x32xf32> to vector<2x32xbf16>
    %cst_105 = arith.constant dense<0.000000e+00> : vector<2x128xf32>
    %305 = tpu.matmul %304, %213, %cst_105 {dimension_numbers = #tpu.dot_dimension_numbers<[1], [0], [0], [1], [0, 0, 1, 1], [], []>} : vector<2x32xbf16>, vector<32x128xbf16>, vector<2x128xf32> -> vector<2x128xf32>
    %306 = arith.addf %303, %305 : vector<2x128xf32>
    %307 = vector.extract_strided_slice %306 {offsets = [0, 0], sizes = [2, 96], strides = [1, 1]} : vector<2x128xf32> to vector<2x96xf32>
    %308 = arith.negf %307 : vector<2x96xf32>
    %309 = math.exp %308 : vector<2x96xf32>
    %cst_106 = arith.constant 1.000000e+00 : f32
    %310 = vector.broadcast %cst_106 : f32 to vector<2x96xf32>
    %311 = arith.addf %310, %309 : vector<2x96xf32>
    %312 = arith.divf %310, %311 : vector<2x96xf32>
    %313 = vector.extract_strided_slice %306 {offsets = [0, 96], sizes = [2, 32], strides = [1, 1]} : vector<2x128xf32> to vector<2x32xf32>
    %314 = math.tanh %313 : vector<2x32xf32>
    %315 = vector.extract_strided_slice %312 {offsets = [0, 0], sizes = [2, 32], strides = [1, 1]} : vector<2x96xf32> to vector<2x32xf32>
    %316 = vector.extract_strided_slice %312 {offsets = [0, 32], sizes = [2, 32], strides = [1, 1]} : vector<2x96xf32> to vector<2x32xf32>
    %317 = vector.extract_strided_slice %312 {offsets = [0, 64], sizes = [2, 32], strides = [1, 1]} : vector<2x96xf32> to vector<2x32xf32>
    %318 = arith.mulf %316, %300 : vector<2x32xf32>
    %319 = arith.mulf %315, %314 : vector<2x32xf32>
    %320 = arith.addf %318, %319 : vector<2x32xf32>
    %321 = math.tanh %320 : vector<2x32xf32>
    %322 = arith.mulf %317, %321 : vector<2x32xf32>
    %c10_107 = arith.constant 10 : index
    %c0_108 = arith.constant 0 : index
    %323 = vector.load %arg14[%c10_107, %c0_108] : memref<16x128xf32, #tpu.memory_space<vmem>>, vector<2x128xf32>
    %324 = arith.truncf %322 : vector<2x32xf32> to vector<2x32xbf16>
    %cst_109 = arith.constant dense<0.000000e+00> : vector<2x128xf32>
    %325 = tpu.matmul %324, %213, %cst_109 {dimension_numbers = #tpu.dot_dimension_numbers<[1], [0], [0], [1], [0, 0, 1, 1], [], []>} : vector<2x32xbf16>, vector<32x128xbf16>, vector<2x128xf32> -> vector<2x128xf32>
    %326 = arith.addf %323, %325 : vector<2x128xf32>
    %327 = vector.extract_strided_slice %326 {offsets = [0, 0], sizes = [2, 96], strides = [1, 1]} : vector<2x128xf32> to vector<2x96xf32>
    %328 = arith.negf %327 : vector<2x96xf32>
    %329 = math.exp %328 : vector<2x96xf32>
    %cst_110 = arith.constant 1.000000e+00 : f32
    %330 = vector.broadcast %cst_110 : f32 to vector<2x96xf32>
    %331 = arith.addf %330, %329 : vector<2x96xf32>
    %332 = arith.divf %330, %331 : vector<2x96xf32>
    %333 = vector.extract_strided_slice %326 {offsets = [0, 96], sizes = [2, 32], strides = [1, 1]} : vector<2x128xf32> to vector<2x32xf32>
    %334 = math.tanh %333 : vector<2x32xf32>
    %335 = vector.extract_strided_slice %332 {offsets = [0, 0], sizes = [2, 32], strides = [1, 1]} : vector<2x96xf32> to vector<2x32xf32>
    %336 = vector.extract_strided_slice %332 {offsets = [0, 32], sizes = [2, 32], strides = [1, 1]} : vector<2x96xf32> to vector<2x32xf32>
    %337 = vector.extract_strided_slice %332 {offsets = [0, 64], sizes = [2, 32], strides = [1, 1]} : vector<2x96xf32> to vector<2x32xf32>
    %338 = arith.mulf %336, %320 : vector<2x32xf32>
    %339 = arith.mulf %335, %334 : vector<2x32xf32>
    %340 = arith.addf %338, %339 : vector<2x32xf32>
    %341 = math.tanh %340 : vector<2x32xf32>
    %342 = arith.mulf %337, %341 : vector<2x32xf32>
    %c12_111 = arith.constant 12 : index
    %c0_112 = arith.constant 0 : index
    %343 = vector.load %arg14[%c12_111, %c0_112] : memref<16x128xf32, #tpu.memory_space<vmem>>, vector<2x128xf32>
    %344 = arith.truncf %342 : vector<2x32xf32> to vector<2x32xbf16>
    %cst_113 = arith.constant dense<0.000000e+00> : vector<2x128xf32>
    %345 = tpu.matmul %344, %213, %cst_113 {dimension_numbers = #tpu.dot_dimension_numbers<[1], [0], [0], [1], [0, 0, 1, 1], [], []>} : vector<2x32xbf16>, vector<32x128xbf16>, vector<2x128xf32> -> vector<2x128xf32>
    %346 = arith.addf %343, %345 : vector<2x128xf32>
    %347 = vector.extract_strided_slice %346 {offsets = [0, 0], sizes = [2, 96], strides = [1, 1]} : vector<2x128xf32> to vector<2x96xf32>
    %348 = arith.negf %347 : vector<2x96xf32>
    %349 = math.exp %348 : vector<2x96xf32>
    %cst_114 = arith.constant 1.000000e+00 : f32
    %350 = vector.broadcast %cst_114 : f32 to vector<2x96xf32>
    %351 = arith.addf %350, %349 : vector<2x96xf32>
    %352 = arith.divf %350, %351 : vector<2x96xf32>
    %353 = vector.extract_strided_slice %346 {offsets = [0, 96], sizes = [2, 32], strides = [1, 1]} : vector<2x128xf32> to vector<2x32xf32>
    %354 = math.tanh %353 : vector<2x32xf32>
    %355 = vector.extract_strided_slice %352 {offsets = [0, 0], sizes = [2, 32], strides = [1, 1]} : vector<2x96xf32> to vector<2x32xf32>
    %356 = vector.extract_strided_slice %352 {offsets = [0, 32], sizes = [2, 32], strides = [1, 1]} : vector<2x96xf32> to vector<2x32xf32>
    %357 = vector.extract_strided_slice %352 {offsets = [0, 64], sizes = [2, 32], strides = [1, 1]} : vector<2x96xf32> to vector<2x32xf32>
    %358 = arith.mulf %356, %340 : vector<2x32xf32>
    %359 = arith.mulf %355, %354 : vector<2x32xf32>
    %360 = arith.addf %358, %359 : vector<2x32xf32>
    %361 = math.tanh %360 : vector<2x32xf32>
    %362 = arith.mulf %357, %361 : vector<2x32xf32>
    %c14_115 = arith.constant 14 : index
    %c0_116 = arith.constant 0 : index
    %363 = vector.load %arg14[%c14_115, %c0_116] : memref<16x128xf32, #tpu.memory_space<vmem>>, vector<2x128xf32>
    %364 = arith.truncf %362 : vector<2x32xf32> to vector<2x32xbf16>
    %cst_117 = arith.constant dense<0.000000e+00> : vector<2x128xf32>
    %365 = tpu.matmul %364, %213, %cst_117 {dimension_numbers = #tpu.dot_dimension_numbers<[1], [0], [0], [1], [0, 0, 1, 1], [], []>} : vector<2x32xbf16>, vector<32x128xbf16>, vector<2x128xf32> -> vector<2x128xf32>
    %366 = arith.addf %363, %365 : vector<2x128xf32>
    %367 = vector.extract_strided_slice %366 {offsets = [0, 0], sizes = [2, 96], strides = [1, 1]} : vector<2x128xf32> to vector<2x96xf32>
    %368 = arith.negf %367 : vector<2x96xf32>
    %369 = math.exp %368 : vector<2x96xf32>
    %cst_118 = arith.constant 1.000000e+00 : f32
    %370 = vector.broadcast %cst_118 : f32 to vector<2x96xf32>
    %371 = arith.addf %370, %369 : vector<2x96xf32>
    %372 = arith.divf %370, %371 : vector<2x96xf32>
    %373 = vector.extract_strided_slice %366 {offsets = [0, 96], sizes = [2, 32], strides = [1, 1]} : vector<2x128xf32> to vector<2x32xf32>
    %374 = math.tanh %373 : vector<2x32xf32>
    %375 = vector.extract_strided_slice %372 {offsets = [0, 0], sizes = [2, 32], strides = [1, 1]} : vector<2x96xf32> to vector<2x32xf32>
    %376 = vector.extract_strided_slice %372 {offsets = [0, 32], sizes = [2, 32], strides = [1, 1]} : vector<2x96xf32> to vector<2x32xf32>
    %377 = vector.extract_strided_slice %372 {offsets = [0, 64], sizes = [2, 32], strides = [1, 1]} : vector<2x96xf32> to vector<2x32xf32>
    %378 = arith.mulf %376, %360 : vector<2x32xf32>
    %379 = arith.mulf %375, %374 : vector<2x32xf32>
    %380 = arith.addf %378, %379 : vector<2x32xf32>
    %381 = math.tanh %380 : vector<2x32xf32>
    %382 = arith.mulf %377, %381 : vector<2x32xf32>
    %c1_119 = arith.constant 1 : index
    %c0_120 = arith.constant 0 : index
    %c0_121 = arith.constant 0 : index
    %383 = vector.load %arg12[%c1_119, %c0_120, %c0_121] : memref<2x2x32xf32, #tpu.memory_space<vmem>>, vector<1x2x32xf32>
    %384 = vector.shape_cast %383 : vector<1x2x32xf32> to vector<2x32xf32>
    %385 = vector.shape_cast %382 : vector<2x32xf32> to vector<1x2x32xf32>
    tpu.vector_store %arg12[%c1_119, %c0_120, %c0_121], %385 {strides = array<i32>} : memref<2x2x32xf32, #tpu.memory_space<vmem>>, vector<1x2x32xf32>,
    %c1_122 = arith.constant 1 : index
    %c0_123 = arith.constant 0 : index
    %c0_124 = arith.constant 0 : index
    %386 = vector.load %arg13[%c1_122, %c0_123, %c0_124] : memref<2x2x32xf32, #tpu.memory_space<vmem>>, vector<1x2x32xf32>
    %387 = vector.shape_cast %386 : vector<1x2x32xf32> to vector<2x32xf32>
    %388 = vector.shape_cast %380 : vector<2x32xf32> to vector<1x2x32xf32>
    tpu.vector_store %arg13[%c1_122, %c0_123, %c0_124], %388 {strides = array<i32>} : memref<2x2x32xf32, #tpu.memory_space<vmem>>, vector<1x2x32xf32>,
    %389 = arith.truncf %382 : vector<2x32xf32> to vector<2x32xbf16>
    %c0_125 = arith.constant 0 : index
    %c0_126 = arith.constant 0 : index
    %390 = vector.load %arg7[%c0_125, %c0_126] : memref<32x64xbf16, #tpu.memory_space<vmem>>, vector<32x64xbf16>
    %cst_127 = arith.constant dense<0.000000e+00> : vector<2x64xf32>
    %391 = tpu.matmul %389, %390, %cst_127 {dimension_numbers = #tpu.dot_dimension_numbers<[1], [0], [0], [1], [0, 0, 1, 1], [], []>} : vector<2x32xbf16>, vector<32x64xbf16>, vector<2x64xf32> -> vector<2x64xf32>
    %c0_128 = arith.constant 0 : index
    %c0_129 = arith.constant 0 : index
    %392 = vector.load %arg8[%c0_128, %c0_129] : memref<1x64xf32, #tpu.memory_space<vmem>>, vector<1x64xf32>
    %393 = vector.broadcast %392 : vector<1x64xf32> to vector<2x64xf32>
    %394 = arith.addf %391, %393 : vector<2x64xf32>
    %c0_130 = arith.constant 0 : index
    %c0_131 = arith.constant 0 : index
    %395 = vector.load %arg11[%c0_130, %c0_131] : memref<2x64xf32, #tpu.memory_space<vmem>>, vector<2x64xf32>
    tpu.vector_store %arg11[%c0_130, %c0_131], %394 {strides = array<i32>} : memref<2x64xf32, #tpu.memory_space<vmem>>, vector<2x64xf32>,
    return
  }
}

</mosaic_0001>

<llo_original>
// kernel: rnn_forward.1
$region0: #{rnn_forward.1}
  #allocation0 [shape = 'u32[]', space=smem, size = 0x4, offset = 0x4, fixed_abs, tag = 'smem constant byte address 0x4 - core index']
  #allocation1 [shape = 'u32[144,128]{1,0:T(1,128)}', space=vmem, size = 0x12000, scoped, tag = 'internal scratch']
  #allocation2 [shape = 'f32[16,128]{1,0:T(8,128)}', space=vmem, size = 0x2000, scoped, tag = 'scratch operand']
  #allocation3 [shape = 'bf16[2,16,32]{2,1,0:T(16,128)(2,1)}', space=vmem, size = 0x2000, scoped, tag = 'scratch operand']
  %s0 = inlined_call_operand.vmem [shape: bf16[16,16], index: 0, kind: input, shape index: {}]
  %s1 = inlined_call_operand.vmem [shape: bf16[16,128], index: 1, kind: input, shape index: {}]
  %s2 = inlined_call_operand.vmem [shape: bf16[32,128], index: 2, kind: input, shape index: {}]
  %s3 = inlined_call_operand.vmem [shape: f32[1,128], index: 3, kind: input, shape index: {}]
  %s4 = inlined_call_operand.vmem [shape: bf16[32,128], index: 4, kind: input, shape index: {}]
  %s5 = inlined_call_operand.vmem [shape: bf16[32,128], index: 5, kind: input, shape index: {}]
  %s6 = inlined_call_operand.vmem [shape: f32[1,128], index: 6, kind: input, shape index: {}]
  %s7 = inlined_call_operand.vmem [shape: bf16[32,64], index: 7, kind: input, shape index: {}]
  %s8 = inlined_call_operand.vmem [shape: f32[1,64], index: 8, kind: input, shape index: {}]
  %s9 = inlined_call_operand.vmem [shape: f32[2,2,32], index: 9, kind: input, shape index: {}]
  %s10 = inlined_call_operand.vmem [shape: f32[2,2,32], index: 10, kind: input, shape index: {}]
  %s11 = inlined_call_operand.hbm [shape: f32[2,64], index: 11, kind: output, shape index: {0}]
  %s12 = inlined_call_operand.hbm [shape: f32[2,2,32], index: 12, kind: output, shape index: {1}]
  %s13 = inlined_call_operand.hbm [shape: f32[2,2,32], index: 13, kind: output, shape index: {2}]
  %14 = xla_tuple %s11, %s12, %s13
  %s15 = sld [smem:[#allocation0]]
  $region70: #{rnn_forward.1} parent=0
    _
  %s17 = ssub.s32 1, %s15
  %s18 = scalar_select 0, %s17, %s15
  $region1: #{rnn_forward.1} parent=0
    #allocation4 [shape = 'u8[1024]{0}', space=vmem, size = 0x400, scoped, tag = 'output window, operand 0, single buffered']
    #allocation5 [shape = 's32[1]{0}', space=sflag, size = 0x4, scoped, tag = 'scoped memory for rnn_forward.1']
    #allocation6 [shape = 'u8[2048]{0}', space=vmem, size = 0x800, scoped, tag = 'output window, operand 1, single buffered']
    #allocation7 [shape = 's32[1]{0}', space=sflag, size = 0x4, scoped, tag = 'scoped memory for rnn_forward.1']
    #allocation8 [shape = 'u8[2048]{0}', space=vmem, size = 0x800, scoped, tag = 'output window, operand 2, single buffered']
    %19 = vsyncpa [#allocation5], 0
    %20 = vsyncpa [#allocation7], 0
    // Predicated region
    $region2: #{rnn_forward.1} parent=1 // pred_check
      _
    $region3: #{rnn_forward.1} parent=1 // pred_check_branch
      %22 = sbr.rel (0) target = $region5
    $region4: #{rnn_forward.1} parent=1 // pred_region
      _
    $region5: #{rnn_forward.1} parent=1 // pred_fallthru
      _
    // Predicated region
    $region6: #{rnn_forward.1} parent=1 // pred_check
      _
    $region7: #{rnn_forward.1} parent=1 // pred_check_branch
      %24 = sbr.rel (0) target = $region9
    $region8: #{rnn_forward.1} parent=1 // pred_region
      _
    $region9: #{rnn_forward.1} parent=1 // pred_fallthru
      _
    // Predicated region
    $region10: #{rnn_forward.1} parent=1 // pred_check
      _
    $region11: #{rnn_forward.1} parent=1 // pred_check_branch
      %26 = sbr.rel (0) target = $region13
    $region12: #{rnn_forward.1} parent=1 // pred_region
      _
    $region13: #{rnn_forward.1} parent=1 // pred_fallthru
      _
    // Predicated region
    $region14: #{rnn_forward.1} parent=1 // pred_check
      _
    $region15: #{rnn_forward.1} parent=1 // pred_check_branch
      %28 = sbr.rel (0) target = $region17
    $region16: #{rnn_forward.1} parent=1 // pred_region
      _
    $region17: #{rnn_forward.1} parent=1 // pred_fallthru
      _
    // Predicated region
    $region18: #{rnn_forward.1} parent=1 // pred_check
      _
    $region19: #{rnn_forward.1} parent=1 // pred_check_branch
      %30 = sbr.rel (0) target = $region21
    $region20: #{rnn_forward.1} parent=1 // pred_region
      _
    $region21: #{rnn_forward.1} parent=1 // pred_fallthru
      _
    // Predicated region
    $region22: #{rnn_forward.1} parent=1 // pred_check
      _
    $region23: #{rnn_forward.1} parent=1 // pred_check_branch
      %32 = sbr.rel (0) target = $region25
    $region24: #{rnn_forward.1} parent=1 // pred_region
      _
    $region25: #{rnn_forward.1} parent=1 // pred_fallthru
      _
    // Predicated region
    $region26: #{rnn_forward.1} parent=1 // pred_check
      _
    $region27: #{rnn_forward.1} parent=1 // pred_check_branch
      %34 = sbr.rel (0) target = $region29
    $region28: #{rnn_forward.1} parent=1 // pred_region
      _
    $region29: #{rnn_forward.1} parent=1 // pred_fallthru
      _
    // Predicated region
    $region30: #{rnn_forward.1} parent=1 // pred_check
      _
    $region31: #{rnn_forward.1} parent=1 // pred_check_branch
      %36 = sbr.rel (0) target = $region33
    $region32: #{rnn_forward.1} parent=1 // pred_region
      _
    $region33: #{rnn_forward.1} parent=1 // pred_fallthru
      _
    // Predicated region
    $region34: #{rnn_forward.1} parent=1 // pred_check
      _
    $region35: #{rnn_forward.1} parent=1 // pred_check_branch
      %38 = sbr.rel (0) target = $region37
    $region36: #{rnn_forward.1} parent=1 // pred_region
      _
    $region37: #{rnn_forward.1} parent=1 // pred_fallthru
      _
    // Predicated region
    $region38: #{rnn_forward.1} parent=1 // pred_check
      _
    $region39: #{rnn_forward.1} parent=1 // pred_check_branch
      %40 = sbr.rel (0) target = $region41
    $region40: #{rnn_forward.1} parent=1 // pred_region
      _
    $region41: #{rnn_forward.1} parent=1 // pred_fallthru
      _
    // Predicated region
    $region42: #{rnn_forward.1} parent=1 // pred_check
      _
    $region43: #{rnn_forward.1} parent=1 // pred_check_branch
      %42 = sbr.rel (0) target = $region45
    $region44: #{rnn_forward.1} parent=1 // pred_region
      _
    $region45: #{rnn_forward.1} parent=1 // pred_fallthru
      _
    %v44 = vld [vmem:[%s0] sm:$0xf]
    %v45 = vld [vmem:[%s0 + $0x4] sm:$0xf]
    %v46 = vld [vmem:[%s1] sm:$0xf]
    %v47 = vld [vmem:[%s1 + $0x4] sm:$0xf]
    %v48 = vld [vmem:[%s2] sm:$0xf]
    %v49 = vld [vmem:[%s2 + $0x4] sm:$0xf]
    %v50 = vld [vmem:[%s2 + $0x8] sm:$0xf]
    %v51 = vld [vmem:[%s2 + $0xc] sm:$0xf]
    %v52 = vld [vmem:[%s3] sm:$0x1]
    %v54 = vlaneseq
    %v55 = vshrl.u32 %v54, 7
    %v56 = vsub.s32 0, %v55
    %v57 = vrot.slane %v52, %v56
    %v61 = vunpack.c.l.b16 %v44
    %v62 = vunpack.c.l.b16 %v45
    %v63 = vpack.c.b16 %v62, %v61
    %v66 = vunpack.c.l.b16 %v46
    %v67 = vunpack.c.l.b16 %v47
    %v68 = vpack.c.b16 %v67, %v66
    %vm70 = vcmask 130048
    %v72 = vsel %vm70, %v63, 0
    %74 = vmatprep.subr.bf16.mxu0 0
    %75 = vmatpush1.bf16.msra.mxu0 %v68
    %76 = vmatprep.subr.bf16.mxu0 0
    %77 = vmatpush1.bf16.msra.mxu0 0
    %78 = vmatprep.subr.bf16.mxu0 0
    %79 = vmatpush1.bf16.msra.mxu0 0
    %80 = vmatprep.subr.bf16.mxu0 0
    %81 = vmatpush1.bf16.msra.mxu0 0
    %82 = vmatprep.subr.bf16.mxu0 0
    %83 = vmatpush1.bf16.msra.mxu0 0
    %84 = vmatprep.subr.bf16.mxu0 0
    %85 = vmatpush1.bf16.msra.mxu0 0
    %86 = vmatprep.subr.bf16.mxu0 0
    %87 = vmatpush1.bf16.msra.mxu0 0
    %88 = vmatprep.subr.bf16.mxu0 0
    %89 = vmatpush1.bf16.msra.mxu0 0
    %90 = vmatprep.subr.bf16.mxu0 0
    %91 = vmatpush1.bf16.msra.mxu0 0
    %92 = vmatprep.subr.bf16.mxu0 0
    %93 = vmatpush1.bf16.msra.mxu0 0
    %94 = vmatprep.subr.bf16.mxu0 0
    %95 = vmatpush1.bf16.msra.mxu0 0
    %96 = vmatprep.subr.bf16.mxu0 0
    %97 = vmatpush1.bf16.msra.mxu0 0
    %98 = vmatprep.subr.bf16.mxu0 0
    %99 = vmatpush1.bf16.msra.mxu0 0
    %100 = vmatprep.subr.bf16.mxu0 0
    %101 = vmatpush1.bf16.msra.mxu0 0
    %102 = vmatprep.subr.bf16.mxu0 0
    %103 = vmatpush1.bf16.msra.mxu0 0
    %104 = vmatprep.subr.bf16.mxu0 0
    %105 = vmatpush1.bf16.msra.mxu0 0
    %106 = vmatprep.mubr.bf16.mxu0 0
    %107 = vmatmul.mubr.bf16.gmra.mrb[0].mxu0 %v72
    %v108 = vpop.f32.mrb[0].mxu0
    %v109 = vadd.f32 %v57, %v108
    %v110 = vpop.f32.mrb[0].mxu0
    %v111 = vpop.f32.mrb[0].mxu0
    %v112 = vadd.f32 %v57, %v111
    %v113 = vpop.f32.mrb[0].mxu0
    %114 = vdwg.mxu0
    %115 = vst [vmem:[#allocation2] sm:$0xff] %v109
    %116 = vst [vmem:[#allocation2 + $0x8] sm:$0xff] %v112
    %v117 = vld [vmem:[%s9] sm:$0x3]
    %v118 = vld [vmem:[%s10] sm:$0x3]
    %v119 = vld [vmem:[#allocation2] sm:$0x3]
    %v120 = vpack.c.bf16 %v117, %v117
    %v125 = vunpack.c.l.b16 %v48
    %v126 = vunpack.c.l.b16 %v49
    %v127 = vunpack.c.l.b16 %v50
    %v128 = vunpack.c.l.b16 %v51
    %v129 = vpack.c.b16 %v126, %v125
    %v130 = vpack.c.b16 %v128, %v127
    %vm133 = vcmask 261120
    %v135 = vsel %vm133, %v120, 0
    %137 = vmatprep.subr.bf16.mxu0 0
    %138 = vmatpush1.bf16.msra.mxu0 %v129
    %139 = vmatprep.subr.bf16.mxu0 0
    %140 = vmatpush1.bf16.msra.mxu0 %v130
    %141 = vmatprep.subr.bf16.mxu0 0
    %142 = vmatpush1.bf16.msra.mxu0 0
    %143 = vmatprep.subr.bf16.mxu0 0
    %144 = vmatpush1.bf16.msra.mxu0 0
    %145 = vmatprep.subr.bf16.mxu0 0
    %146 = vmatpush1.bf16.msra.mxu0 0
    %147 = vmatprep.subr.bf16.mxu0 0
    %148 = vmatpush1.bf16.msra.mxu0 0
    %149 = vmatprep.subr.bf16.mxu0 0
    %150 = vmatpush1.bf16.msra.mxu0 0
    %151 = vmatprep.subr.bf16.mxu0 0
    %152 = vmatpush1.bf16.msra.mxu0 0
    %153 = vmatprep.subr.bf16.mxu0 0
    %154 = vmatpush1.bf16.msra.mxu0 0
    %155 = vmatprep.subr.bf16.mxu0 0
    %156 = vmatpush1.bf16.msra.mxu0 0
    %157 = vmatprep.subr.bf16.mxu0 0
    %158 = vmatpush1.bf16.msra.mxu0 0
    %159 = vmatprep.subr.bf16.mxu0 0
    %160 = vmatpush1.bf16.msra.mxu0 0
    %161 = vmatprep.subr.bf16.mxu0 0
    %162 = vmatpush1.bf16.msra.mxu0 0
    %163 = vmatprep.subr.bf16.mxu0 0
    %164 = vmatpush1.bf16.msra.mxu0 0
    %165 = vmatprep.subr.bf16.mxu0 0
    %166 = vmatpush1.bf16.msra.mxu0 0
    %167 = vmatprep.subr.bf16.mxu0 0
    %168 = vmatpush1.bf16.msra.mxu0 0
    %169 = vmatprep.mubr.bf16.mxu0 0
    %170 = vmatmul.mubr.bf16.gmra.mrb[0].mxu0 %v135
    %v171 = vpop.f32.mrb[0].mxu0
    %v172 = vadd.f32 0.0, %v171
    %v173 = vpop.f32.mrb[0].mxu0
    %v174 = vpop.f32.mrb[0].mxu0
    %v175 = vpop.f32.mrb[0].mxu0
    %176 = vdwg.mxu0
    %v177 = vadd.f32 %v119, %v172
    %v178 = vxor.u32 %v177, 2147483648
    %v179 = vmul.f32 %v178, 1.442695
    %v180 = vpow.pop %v179
    %v181 = vadd.f32 %v180, 1.0
    %v182 = vrcp.pop %v181
    %v183 = vmul.f32 1.0, %v182
    %v184 = vtanh.pop %v177
    %186 = vrot.lane.b32.xlu0 %v118, 32
    %v187 = vpop.permute.xlu0 %186
    %v189 = vmul.f32 %v183, %v187
    %191 = vrot.lane.b32.xlu0 %v184, 32
    %v192 = vpop.permute.xlu0 %191
    %v194 = vmul.f32 %v183, %v192
    %196 = vrot.lane.b32.xlu0 %v194, 32
    %v197 = vpop.permute.xlu0 %196
    %v199 = vadd.f32 %v189, %v197
    %v200 = vtanh.pop %v199
    %202 = vrot.lane.b32.xlu0 %v200, 32
    %v203 = vpop.permute.xlu0 %202
    %v205 = vmul.f32 %v183, %v203
    %v206 = vpack.c.bf16 %v205, %v205
    %208 = vrot.lane.b32.xlu0 %v206, 64
    %v209 = vpop.permute.xlu0 %208
    %vm211 = vcmask 253952
    %212 = vst.msk [vmem:[#allocation3] sm:$0x1] %vm211, %v209
    %v213 = vld [vmem:[#allocation2 + $0x2] sm:$0x3]
    %v215 = vsel %vm133, %v209, 0
    %217 = vmatprep.subr.bf16.mxu0 0
    %218 = vmatpush1.bf16.msra.mxu0 %v129
    %219 = vmatprep.subr.bf16.mxu0 0
    %220 = vmatpush1.bf16.msra.mxu0 %v130
    %221 = vmatprep.subr.bf16.mxu0 0
    %222 = vmatpush1.bf16.msra.mxu0 0
    %223 = vmatprep.subr.bf16.mxu0 0
    %224 = vmatpush1.bf16.msra.mxu0 0
    %225 = vmatprep.subr.bf16.mxu0 0
    %226 = vmatpush1.bf16.msra.mxu0 0
    %227 = vmatprep.subr.bf16.mxu0 0
    %228 = vmatpush1.bf16.msra.mxu0 0
    %229 = vmatprep.subr.bf16.mxu0 0
    %230 = vmatpush1.bf16.msra.mxu0 0
    %231 = vmatprep.subr.bf16.mxu0 0
    %232 = vmatpush1.bf16.msra.mxu0 0
    %233 = vmatprep.subr.bf16.mxu0 0
    %234 = vmatpush1.bf16.msra.mxu0 0
    %235 = vmatprep.subr.bf16.mxu0 0
    %236 = vmatpush1.bf16.msra.mxu0 0
    %237 = vmatprep.subr.bf16.mxu0 0
    %238 = vmatpush1.bf16.msra.mxu0 0
    %239 = vmatprep.subr.bf16.mxu0 0
    %240 = vmatpush1.bf16.msra.mxu0 0
    %241 = vmatprep.subr.bf16.mxu0 0
    %242 = vmatpush1.bf16.msra.mxu0 0
    %243 = vmatprep.subr.bf16.mxu0 0
    %244 = vmatpush1.bf16.msra.mxu0 0
    %245 = vmatprep.subr.bf16.mxu0 0
    %246 = vmatpush1.bf16.msra.mxu0 0
    %247 = vmatprep.subr.bf16.mxu0 0
    %248 = vmatpush1.bf16.msra.mxu0 0
    %249 = vmatprep.mubr.bf16.mxu0 0
    %250 = vmatmul.mubr.bf16.gmra.mrb[0].mxu0 %v215
    %v251 = vpop.f32.mrb[0].mxu0
    %v252 = vadd.f32 0.0, %v251
    %v253 = vpop.f32.mrb[0].mxu0
    %v254 = vpop.f32.mrb[0].mxu0
    %v255 = vpop.f32.mrb[0].mxu0
    %256 = vdwg.mxu0
    %v257 = vadd.f32 %v213, %v252
    %v258 = vxor.u32 %v257, 2147483648
    %v259 = vmul.f32 %v258, 1.442695
    %v260 = vpow.pop %v259
    %v261 = vadd.f32 %v260, 1.0
    %v262 = vrcp.pop %v261
    %v263 = vmul.f32 1.0, %v262
    %v264 = vtanh.pop %v257
    %v265 = vmul.f32 %v263, %v199
    %267 = vrot.lane.b32.xlu0 %v264, 32
    %v268 = vpop.permute.xlu0 %267
    %v270 = vmul.f32 %v263, %v268
    %272 = vrot.lane.b32.xlu0 %v270, 32
    %v273 = vpop.permute.xlu0 %272
    %v275 = vadd.f32 %v265, %v273
    %v276 = vtanh.pop %v275
    %278 = vrot.lane.b32.xlu0 %v276, 32
    %v279 = vpop.permute.xlu0 %278
    %v281 = vmul.f32 %v263, %v279
    %v282 = vpack.c.bf16 %v281, %v281
    %v284 = vrot.slane %v282, 7
    %285 = vrot.lane.b32.xlu0 %v284, 64
    %v286 = vpop.permute.xlu0 %285
    %vm288 = vcmask 254977
    %289 = vst.msk [vmem:[#allocation3] sm:$0x2] %vm288, %v286
    %v290 = vld [vmem:[#allocation2 + $0x4] sm:$0x3]
    %291 = vrot.lane.b32.xlu0 %v282, 64
    %v292 = vpop.permute.xlu0 %291
    %v294 = vsel %vm133, %v292, 0
    %296 = vmatprep.subr.bf16.mxu0 0
    %297 = vmatpush1.bf16.msra.mxu0 %v129
    %298 = vmatprep.subr.bf16.mxu0 0
    %299 = vmatpush1.bf16.msra.mxu0 %v130
    %300 = vmatprep.subr.bf16.mxu0 0
    %301 = vmatpush1.bf16.msra.mxu0 0
    %302 = vmatprep.subr.bf16.mxu0 0
    %303 = vmatpush1.bf16.msra.mxu0 0
    %304 = vmatprep.subr.bf16.mxu0 0
    %305 = vmatpush1.bf16.msra.mxu0 0
    %306 = vmatprep.subr.bf16.mxu0 0
    %307 = vmatpush1.bf16.msra.mxu0 0
    %308 = vmatprep.subr.bf16.mxu0 0
    %309 = vmatpush1.bf16.msra.mxu0 0
    %310 = vmatprep.subr.bf16.mxu0 0
    %311 = vmatpush1.bf16.msra.mxu0 0
    %312 = vmatprep.subr.bf16.mxu0 0
    %313 = vmatpush1.bf16.msra.mxu0 0
    %314 = vmatprep.subr.bf16.mxu0 0
    %315 = vmatpush1.bf16.msra.mxu0 0
    %316 = vmatprep.subr.bf16.mxu0 0
    %317 = vmatpush1.bf16.msra.mxu0 0
    %318 = vmatprep.subr.bf16.mxu0 0
    %319 = vmatpush1.bf16.msra.mxu0 0
    %320 = vmatprep.subr.bf16.mxu0 0
    %321 = vmatpush1.bf16.msra.mxu0 0
    %322 = vmatprep.subr.bf16.mxu0 0
    %323 = vmatpush1.bf16.msra.mxu0 0
    %324 = vmatprep.subr.bf16.mxu0 0
    %325 = vmatpush1.bf16.msra.mxu0 0
    %326 = vmatprep.subr.bf16.mxu0 0
    %327 = vmatpush1.bf16.msra.mxu0 0
    %328 = vmatprep.mubr.bf16.mxu0 0
    %329 = vmatmul.mubr.bf16.gmra.mrb[0].mxu0 %v294
    %v330 = vpop.f32.mrb[0].mxu0
    %v331 = vadd.f32 0.0, %v330
    %v332 = vpop.f32.mrb[0].mxu0
    %v333 = vpop.f32.mrb[0].mxu0
    %v334 = vpop.f32.mrb[0].mxu0
    %335 = vdwg.mxu0
    %v336 = vadd.f32 %v290, %v331
    %v337 = vxor.u32 %v336, 2147483648
    %v338 = vmul.f32 %v337, 1.442695
    %v339 = vpow.pop %v338
    %v340 = vadd.f32 %v339, 1.0
    %v341 = vrcp.pop %v340
    %v342 = vmul.f32 1.0, %v341
    %v343 = vtanh.pop %v336
    %v344 = vmul.f32 %v342, %v275
    %346 = vrot.lane.b32.xlu0 %v343, 32
    %v347 = vpop.permute.xlu0 %346
    %v349 = vmul.f32 %v342, %v347
    %351 = vrot.lane.b32.xlu0 %v349, 32
    %v352 = vpop.permute.xlu0 %351
    %v354 = vadd.f32 %v344, %v352
    %v355 = vtanh.pop %v354
    %357 = vrot.lane.b32.xlu0 %v355, 32
    %v358 = vpop.permute.xlu0 %357
    %v360 = vmul.f32 %v342, %v358
    %v361 = vpack.c.bf16 %v360, %v360
    %v363 = vrot.slane %v361, 6
    %364 = vrot.lane.b32.xlu0 %v363, 64
    %v365 = vpop.permute.xlu0 %364
    %vm367 = vcmask 256002
    %368 = vst.msk [vmem:[#allocation3] sm:$0x4] %vm367, %v365
    %v369 = vld [vmem:[#allocation2 + $0x6] sm:$0x3]
    %370 = vrot.lane.b32.xlu0 %v361, 64
    %v371 = vpop.permute.xlu0 %370
    %v373 = vsel %vm133, %v371, 0
    %375 = vmatprep.subr.bf16.mxu0 0
    %376 = vmatpush1.bf16.msra.mxu0 %v129
    %377 = vmatprep.subr.bf16.mxu0 0
    %378 = vmatpush1.bf16.msra.mxu0 %v130
    %379 = vmatprep.subr.bf16.mxu0 0
    %380 = vmatpush1.bf16.msra.mxu0 0
    %381 = vmatprep.subr.bf16.mxu0 0
    %382 = vmatpush1.bf16.msra.mxu0 0
    %383 = vmatprep.subr.bf16.mxu0 0
    %384 = vmatpush1.bf16.msra.mxu0 0
    %385 = vmatprep.subr.bf16.mxu0 0
    %386 = vmatpush1.bf16.msra.mxu0 0
    %387 = vmatprep.subr.bf16.mxu0 0
    %388 = vmatpush1.bf16.msra.mxu0 0
    %389 = vmatprep.subr.bf16.mxu0 0
    %390 = vmatpush1.bf16.msra.mxu0 0
    %391 = vmatprep.subr.bf16.mxu0 0
    %392 = vmatpush1.bf16.msra.mxu0 0
    %393 = vmatprep.subr.bf16.mxu0 0
    %394 = vmatpush1.bf16.msra.mxu0 0
    %395 = vmatprep.subr.bf16.mxu0 0
    %396 = vmatpush1.bf16.msra.mxu0 0
    %397 = vmatprep.subr.bf16.mxu0 0
    %398 = vmatpush1.bf16.msra.mxu0 0
    %399 = vmatprep.subr.bf16.mxu0 0
    %400 = vmatpush1.bf16.msra.mxu0 0
    %401 = vmatprep.subr.bf16.mxu0 0
    %402 = vmatpush1.bf16.msra.mxu0 0
    %403 = vmatprep.subr.bf16.mxu0 0
    %404 = vmatpush1.bf16.msra.mxu0 0
    %405 = vmatprep.subr.bf16.mxu0 0
    %406 = vmatpush1.bf16.msra.mxu0 0
    %407 = vmatprep.mubr.bf16.mxu0 0
    %408 = vmatmul.mubr.bf16.gmra.mrb[0].mxu0 %v373
    %v409 = vpop.f32.mrb[0].mxu0
    %v410 = vadd.f32 0.0, %v409
    %v411 = vpop.f32.mrb[0].mxu0
    %v412 = vpop.f32.mrb[0].mxu0
    %v413 = vpop.f32.mrb[0].mxu0
    %414 = vdwg.mxu0
    %v415 = vadd.f32 %v369, %v410
    %v416 = vxor.u32 %v415, 2147483648
    %v417 = vmul.f32 %v416, 1.442695
    %v418 = vpow.pop %v417
    %v419 = vadd.f32 %v418, 1.0
    %v420 = vrcp.pop %v419
    %v421 = vmul.f32 1.0, %v420
    %v422 = vtanh.pop %v415
    %v423 = vmul.f32 %v421, %v354
    %425 = vrot.lane.b32.xlu0 %v422, 32
    %v426 = vpop.permute.xlu0 %425
    %v428 = vmul.f32 %v421, %v426
    %430 = vrot.lane.b32.xlu0 %v428, 32
    %v431 = vpop.permute.xlu0 %430
    %v433 = vadd.f32 %v423, %v431
    %v434 = vtanh.pop %v433
    %436 = vrot.lane.b32.xlu0 %v434, 32
    %v437 = vpop.permute.xlu0 %436
    %v439 = vmul.f32 %v421, %v437
    %v440 = vpack.c.bf16 %v439, %v439
    %v442 = vrot.slane %v440, 5
    %443 = vrot.lane.b32.xlu0 %v442, 64
    %v444 = vpop.permute.xlu0 %443
    %vm446 = vcmask 257027
    %447 = vst.msk [vmem:[#allocation3] sm:$0x8] %vm446, %v444
    %v448 = vld [vmem:[#allocation2 + $0x8] sm:$0x3]
    %449 = vrot.lane.b32.xlu0 %v440, 64
    %v450 = vpop.permute.xlu0 %449
    %v452 = vsel %vm133, %v450, 0
    %454 = vmatprep.subr.bf16.mxu0 0
    %455 = vmatpush1.bf16.msra.mxu0 %v129
    %456 = vmatprep.subr.bf16.mxu0 0
    %457 = vmatpush1.bf16.msra.mxu0 %v130
    %458 = vmatprep.subr.bf16.mxu0 0
    %459 = vmatpush1.bf16.msra.mxu0 0
    %460 = vmatprep.subr.bf16.mxu0 0
    %461 = vmatpush1.bf16.msra.mxu0 0
    %462 = vmatprep.subr.bf16.mxu0 0
    %463 = vmatpush1.bf16.msra.mxu0 0
    %464 = vmatprep.subr.bf16.mxu0 0
    %465 = vmatpush1.bf16.msra.mxu0 0
    %466 = vmatprep.subr.bf16.mxu0 0
    %467 = vmatpush1.bf16.msra.mxu0 0
    %468 = vmatprep.subr.bf16.mxu0 0
    %469 = vmatpush1.bf16.msra.mxu0 0
    %470 = vmatprep.subr.bf16.mxu0 0
    %471 = vmatpush1.bf16.msra.mxu0 0
    %472 = vmatprep.subr.bf16.mxu0 0
    %473 = vmatpush1.bf16.msra.mxu0 0
    %474 = vmatprep.subr.bf16.mxu0 0
    %475 = vmatpush1.bf16.msra.mxu0 0
    %476 = vmatprep.subr.bf16.mxu0 0
    %477 = vmatpush1.bf16.msra.mxu0 0
    %478 = vmatprep.subr.bf16.mxu0 0
    %479 = vmatpush1.bf16.msra.mxu0 0
    %480 = vmatprep.subr.bf16.mxu0 0
    %481 = vmatpush1.bf16.msra.mxu0 0
    %482 = vmatprep.subr.bf16.mxu0 0
    %483 = vmatpush1.bf16.msra.mxu0 0
    %484 = vmatprep.subr.bf16.mxu0 0
    %485 = vmatpush1.bf16.msra.mxu0 0
    %486 = vmatprep.mubr.bf16.mxu0 0
    %487 = vmatmul.mubr.bf16.gmra.mrb[0].mxu0 %v452
    %v488 = vpop.f32.mrb[0].mxu0
    %v489 = vadd.f32 0.0, %v488
    %v490 = vpop.f32.mrb[0].mxu0
    %v491 = vpop.f32.mrb[0].mxu0
    %v492 = vpop.f32.mrb[0].mxu0
    %493 = vdwg.mxu0
    %v494 = vadd.f32 %v448, %v489
    %v495 = vxor.u32 %v494, 2147483648
    %v496 = vmul.f32 %v495, 1.442695
    %v497 = vpow.pop %v496
    %v498 = vadd.f32 %v497, 1.0
    %v499 = vrcp.pop %v498
    %v500 = vmul.f32 1.0, %v499
    %v501 = vtanh.pop %v494
    %v502 = vmul.f32 %v500, %v433
    %504 = vrot.lane.b32.xlu0 %v501, 32
    %v505 = vpop.permute.xlu0 %504
    %v507 = vmul.f32 %v500, %v505
    %509 = vrot.lane.b32.xlu0 %v507, 32
    %v510 = vpop.permute.xlu0 %509
    %v512 = vadd.f32 %v502, %v510
    %v513 = vtanh.pop %v512
    %515 = vrot.lane.b32.xlu0 %v513, 32
    %v516 = vpop.permute.xlu0 %515
    %v518 = vmul.f32 %v500, %v516
    %v519 = vpack.c.bf16 %v518, %v518
    %v521 = vrot.slane %v519, 4
    %522 = vrot.lane.b32.xlu0 %v521, 64
    %v523 = vpop.permute.xlu0 %522
    %vm525 = vcmask 258052
    %526 = vst.msk [vmem:[#allocation3] sm:$0x10] %vm525, %v523
    %v527 = vld [vmem:[#allocation2 + $0xa] sm:$0x3]
    %528 = vrot.lane.b32.xlu0 %v519, 64
    %v529 = vpop.permute.xlu0 %528
    %v531 = vsel %vm133, %v529, 0
    %533 = vmatprep.subr.bf16.mxu0 0
    %534 = vmatpush1.bf16.msra.mxu0 %v129
    %535 = vmatprep.subr.bf16.mxu0 0
    %536 = vmatpush1.bf16.msra.mxu0 %v130
    %537 = vmatprep.subr.bf16.mxu0 0
    %538 = vmatpush1.bf16.msra.mxu0 0
    %539 = vmatprep.subr.bf16.mxu0 0
    %540 = vmatpush1.bf16.msra.mxu0 0
    %541 = vmatprep.subr.bf16.mxu0 0
    %542 = vmatpush1.bf16.msra.mxu0 0
    %543 = vmatprep.subr.bf16.mxu0 0
    %544 = vmatpush1.bf16.msra.mxu0 0
    %545 = vmatprep.subr.bf16.mxu0 0
    %546 = vmatpush1.bf16.msra.mxu0 0
    %547 = vmatprep.subr.bf16.mxu0 0
    %548 = vmatpush1.bf16.msra.mxu0 0
    %549 = vmatprep.subr.bf16.mxu0 0
    %550 = vmatpush1.bf16.msra.mxu0 0
    %551 = vmatprep.subr.bf16.mxu0 0
    %552 = vmatpush1.bf16.msra.mxu0 0
    %553 = vmatprep.subr.bf16.mxu0 0
    %554 = vmatpush1.bf16.msra.mxu0 0
    %555 = vmatprep.subr.bf16.mxu0 0
    %556 = vmatpush1.bf16.msra.mxu0 0
    %557 = vmatprep.subr.bf16.mxu0 0
    %558 = vmatpush1.bf16.msra.mxu0 0
    %559 = vmatprep.subr.bf16.mxu0 0
    %560 = vmatpush1.bf16.msra.mxu0 0
    %561 = vmatprep.subr.bf16.mxu0 0
    %562 = vmatpush1.bf16.msra.mxu0 0
    %563 = vmatprep.subr.bf16.mxu0 0
    %564 = vmatpush1.bf16.msra.mxu0 0
    %565 = vmatprep.mubr.bf16.mxu0 0
    %566 = vmatmul.mubr.bf16.gmra.mrb[0].mxu0 %v531
    %v567 = vpop.f32.mrb[0].mxu0
    %v568 = vadd.f32 0.0, %v567
    %v569 = vpop.f32.mrb[0].mxu0
    %v570 = vpop.f32.mrb[0].mxu0
    %v571 = vpop.f32.mrb[0].mxu0
    %572 = vdwg.mxu0
    %v573 = vadd.f32 %v527, %v568
    %v574 = vxor.u32 %v573, 2147483648
    %v575 = vmul.f32 %v574, 1.442695
    %v576 = vpow.pop %v575
    %v577 = vadd.f32 %v576, 1.0
    %v578 = vrcp.pop %v577
    %v579 = vmul.f32 1.0, %v578
    %v580 = vtanh.pop %v573
    %v581 = vmul.f32 %v579, %v512
    %583 = vrot.lane.b32.xlu0 %v580, 32
    %v584 = vpop.permute.xlu0 %583
    %v586 = vmul.f32 %v579, %v584
    %588 = vrot.lane.b32.xlu0 %v586, 32
    %v589 = vpop.permute.xlu0 %588
    %v591 = vadd.f32 %v581, %v589
    %v592 = vtanh.pop %v591
    %594 = vrot.lane.b32.xlu0 %v592, 32
    %v595 = vpop.permute.xlu0 %594
    %v597 = vmul.f32 %v579, %v595
    %v598 = vpack.c.bf16 %v597, %v597
    %v600 = vrot.slane %v598, 3
    %601 = vrot.lane.b32.xlu0 %v600, 64
    %v602 = vpop.permute.xlu0 %601
    %vm604 = vcmask 259077
    %605 = vst.msk [vmem:[#allocation3] sm:$0x20] %vm604, %v602
    %v606 = vld [vmem:[#allocation2 + $0xc] sm:$0x3]
    %607 = vrot.lane.b32.xlu0 %v598, 64
    %v608 = vpop.permute.xlu0 %607
    %v610 = vsel %vm133, %v608, 0
    %612 = vmatprep.subr.bf16.mxu0 0
    %613 = vmatpush1.bf16.msra.mxu0 %v129
    %614 = vmatprep.subr.bf16.mxu0 0
    %615 = vmatpush1.bf16.msra.mxu0 %v130
    %616 = vmatprep.subr.bf16.mxu0 0
    %617 = vmatpush1.bf16.msra.mxu0 0
    %618 = vmatprep.subr.bf16.mxu0 0
    %619 = vmatpush1.bf16.msra.mxu0 0
    %620 = vmatprep.subr.bf16.mxu0 0
    %621 = vmatpush1.bf16.msra.mxu0 0
    %622 = vmatprep.subr.bf16.mxu0 0
    %623 = vmatpush1.bf16.msra.mxu0 0
    %624 = vmatprep.subr.bf16.mxu0 0
    %625 = vmatpush1.bf16.msra.mxu0 0
    %626 = vmatprep.subr.bf16.mxu0 0
    %627 = vmatpush1.bf16.msra.mxu0 0
    %628 = vmatprep.subr.bf16.mxu0 0
    %629 = vmatpush1.bf16.msra.mxu0 0
    %630 = vmatprep.subr.bf16.mxu0 0
    %631 = vmatpush1.bf16.msra.mxu0 0
    %632 = vmatprep.subr.bf16.mxu0 0
    %633 = vmatpush1.bf16.msra.mxu0 0
    %634 = vmatprep.subr.bf16.mxu0 0
    %635 = vmatpush1.bf16.msra.mxu0 0
    %636 = vmatprep.subr.bf16.mxu0 0
    %637 = vmatpush1.bf16.msra.mxu0 0
    %638 = vmatprep.subr.bf16.mxu0 0
    %639 = vmatpush1.bf16.msra.mxu0 0
    %640 = vmatprep.subr.bf16.mxu0 0
    %641 = vmatpush1.bf16.msra.mxu0 0
    %642 = vmatprep.subr.bf16.mxu0 0
    %643 = vmatpush1.bf16.msra.mxu0 0
    %644 = vmatprep.mubr.bf16.mxu0 0
    %645 = vmatmul.mubr.bf16.gmra.mrb[0].mxu0 %v610
    %v646 = vpop.f32.mrb[0].mxu0
    %v647 = vadd.f32 0.0, %v646
    %v648 = vpop.f32.mrb[0].mxu0
    %v649 = vpop.f32.mrb[0].mxu0
    %v650 = vpop.f32.mrb[0].mxu0
    %651 = vdwg.mxu0
    %v652 = vadd.f32 %v606, %v647
    %v653 = vxor.u32 %v652, 2147483648
    %v654 = vmul.f32 %v653, 1.442695
    %v655 = vpow.pop %v654
    %v656 = vadd.f32 %v655, 1.0
    %v657 = vrcp.pop %v656
    %v658 = vmul.f32 1.0, %v657
    %v659 = vtanh.pop %v652
    %v660 = vmul.f32 %v658, %v591
    %662 = vrot.lane.b32.xlu0 %v659, 32
    %v663 = vpop.permute.xlu0 %662
    %v665 = vmul.f32 %v658, %v663
    %667 = vrot.lane.b32.xlu0 %v665, 32
    %v668 = vpop.permute.xlu0 %667
    %v670 = vadd.f32 %v660, %v668
    %v671 = vtanh.pop %v670
    %673 = vrot.lane.b32.xlu0 %v671, 32
    %v674 = vpop.permute.xlu0 %673
    %v676 = vmul.f32 %v658, %v674
    %v677 = vpack.c.bf16 %v676, %v676
    %v679 = vrot.slane %v677, 2
    %680 = vrot.lane.b32.xlu0 %v679, 64
    %v681 = vpop.permute.xlu0 %680
    %vm683 = vcmask 260102
    %684 = vst.msk [vmem:[#allocation3] sm:$0x40] %vm683, %v681
    %v685 = vld [vmem:[#allocation2 + $0xe] sm:$0x3]
    %686 = vrot.lane.b32.xlu0 %v677, 64
    %v687 = vpop.permute.xlu0 %686
    %v689 = vsel %vm133, %v687, 0
    %691 = vmatprep.subr.bf16.mxu0 0
    %692 = vmatpush1.bf16.msra.mxu0 %v129
    %693 = vmatprep.subr.bf16.mxu0 0
    %694 = vmatpush1.bf16.msra.mxu0 %v130
    %695 = vmatprep.subr.bf16.mxu0 0
    %696 = vmatpush1.bf16.msra.mxu0 0
    %697 = vmatprep.subr.bf16.mxu0 0
    %698 = vmatpush1.bf16.msra.mxu0 0
    %699 = vmatprep.subr.bf16.mxu0 0
    %700 = vmatpush1.bf16.msra.mxu0 0
    %701 = vmatprep.subr.bf16.mxu0 0
    %702 = vmatpush1.bf16.msra.mxu0 0
    %703 = vmatprep.subr.bf16.mxu0 0
    %704 = vmatpush1.bf16.msra.mxu0 0
    %705 = vmatprep.subr.bf16.mxu0 0
    %706 = vmatpush1.bf16.msra.mxu0 0
    %707 = vmatprep.subr.bf16.mxu0 0
    %708 = vmatpush1.bf16.msra.mxu0 0
    %709 = vmatprep.subr.bf16.mxu0 0
    %710 = vmatpush1.bf16.msra.mxu0 0
    %711 = vmatprep.subr.bf16.mxu0 0
    %712 = vmatpush1.bf16.msra.mxu0 0
    %713 = vmatprep.subr.bf16.mxu0 0
    %714 = vmatpush1.bf16.msra.mxu0 0
    %715 = vmatprep.subr.bf16.mxu0 0
    %716 = vmatpush1.bf16.msra.mxu0 0
    %717 = vmatprep.subr.bf16.mxu0 0
    %718 = vmatpush1.bf16.msra.mxu0 0
    %719 = vmatprep.subr.bf16.mxu0 0
    %720 = vmatpush1.bf16.msra.mxu0 0
    %721 = vmatprep.subr.bf16.mxu0 0
    %722 = vmatpush1.bf16.msra.mxu0 0
    %723 = vmatprep.mubr.bf16.mxu0 0
    %724 = vmatmul.mubr.bf16.gmra.mrb[0].mxu0 %v689
    %v725 = vpop.f32.mrb[0].mxu0
    %v726 = vadd.f32 0.0, %v725
    %v727 = vpop.f32.mrb[0].mxu0
    %v728 = vpop.f32.mrb[0].mxu0
    %v729 = vpop.f32.mrb[0].mxu0
    %730 = vdwg.mxu0
    %v731 = vadd.f32 %v685, %v726
    %v732 = vxor.u32 %v731, 2147483648
    %v733 = vmul.f32 %v732, 1.442695
    %v734 = vpow.pop %v733
    %v735 = vadd.f32 %v734, 1.0
    %v736 = vrcp.pop %v735
    %v737 = vmul.f32 1.0, %v736
    %v738 = vtanh.pop %v731
    %v739 = vmul.f32 %v737, %v670
    %741 = vrot.lane.b32.xlu0 %v738, 32
    %v742 = vpop.permute.xlu0 %741
    %v744 = vmul.f32 %v737, %v742
    %746 = vrot.lane.b32.xlu0 %v744, 32
    %v747 = vpop.permute.xlu0 %746
    %v749 = vadd.f32 %v739, %v747
    %v750 = vtanh.pop %v749
    %752 = vrot.lane.b32.xlu0 %v750, 32
    %v753 = vpop.permute.xlu0 %752
    %v755 = vmul.f32 %v737, %v753
    %v756 = vpack.c.bf16 %v755, %v755
    %v758 = vrot.slane %v756, 1
    %759 = vrot.lane.b32.xlu0 %v758, 64
    %v760 = vpop.permute.xlu0 %759
    %vm762 = vcmask 261127
    %763 = vst.msk [vmem:[#allocation3] sm:$0x80] %vm762, %v760
    %765 = vrot.lane.b32.xlu0 %v755, 64
    %v766 = vpop.permute.xlu0 %765
    %vm768 = vcmask 254976
    %769 = vst.msk [vmem:[#allocation6] sm:$0x3] %vm768, %v766
    %771 = vrot.lane.b32.xlu0 %v749, 96
    %v772 = vpop.permute.xlu0 %771
    %774 = vst.msk [vmem:[#allocation8] sm:$0x3] %vm768, %v772
    %v775 = vld [vmem:[#allocation3] sm:$0xff]
    %v776 = vld [vmem:[%s4] sm:$0xf]
    %v777 = vld [vmem:[%s4 + $0x4] sm:$0xf]
    %v778 = vld [vmem:[%s4 + $0x8] sm:$0xf]
    %v779 = vld [vmem:[%s4 + $0xc] sm:$0xf]
    %v780 = vld [vmem:[%s5] sm:$0xf]
    %v781 = vld [vmem:[%s5 + $0x4] sm:$0xf]
    %v782 = vld [vmem:[%s5 + $0x8] sm:$0xf]
    %v783 = vld [vmem:[%s5 + $0xc] sm:$0xf]
    %v784 = vld [vmem:[%s6] sm:$0x1]
    %v786 = vlaneseq
    %v787 = vshrl.u32 %v786, 7
    %v788 = vsub.s32 0, %v787
    %v789 = vrot.slane %v784, %v788
    %v795 = vunpack.c.l.b16 %v776
    %v796 = vunpack.c.l.b16 %v777
    %v797 = vunpack.c.l.b16 %v778
    %v798 = vunpack.c.l.b16 %v779
    %v799 = vpack.c.b16 %v796, %v795
    %v800 = vpack.c.b16 %v798, %v797
    %v804 = vsel %vm133, %v775, 0
    %806 = vmatprep.subr.bf16.mxu0 0
    %807 = vmatpush1.bf16.msra.mxu0 %v799
    %808 = vmatprep.subr.bf16.mxu0 0
    %809 = vmatpush1.bf16.msra.mxu0 %v800
    %810 = vmatprep.subr.bf16.mxu0 0
    %811 = vmatpush1.bf16.msra.mxu0 0
    %812 = vmatprep.subr.bf16.mxu0 0
    %813 = vmatpush1.bf16.msra.mxu0 0
    %814 = vmatprep.subr.bf16.mxu0 0
    %815 = vmatpush1.bf16.msra.mxu0 0
    %816 = vmatprep.subr.bf16.mxu0 0
    %817 = vmatpush1.bf16.msra.mxu0 0
    %818 = vmatprep.subr.bf16.mxu0 0
    %819 = vmatpush1.bf16.msra.mxu0 0
    %820 = vmatprep.subr.bf16.mxu0 0
    %821 = vmatpush1.bf16.msra.mxu0 0
    %822 = vmatprep.subr.bf16.mxu0 0
    %823 = vmatpush1.bf16.msra.mxu0 0
    %824 = vmatprep.subr.bf16.mxu0 0
    %825 = vmatpush1.bf16.msra.mxu0 0
    %826 = vmatprep.subr.bf16.mxu0 0
    %827 = vmatpush1.bf16.msra.mxu0 0
    %828 = vmatprep.subr.bf16.mxu0 0
    %829 = vmatpush1.bf16.msra.mxu0 0
    %830 = vmatprep.subr.bf16.mxu0 0
    %831 = vmatpush1.bf16.msra.mxu0 0
    %832 = vmatprep.subr.bf16.mxu0 0
    %833 = vmatpush1.bf16.msra.mxu0 0
    %834 = vmatprep.subr.bf16.mxu0 0
    %835 = vmatpush1.bf16.msra.mxu0 0
    %836 = vmatprep.subr.bf16.mxu0 0
    %837 = vmatpush1.bf16.msra.mxu0 0
    %838 = vmatprep.mubr.bf16.mxu0 0
    %839 = vmatmul.mubr.bf16.gmra.mrb[0].mxu0 %v804
    %v840 = vpop.f32.mrb[0].mxu0
    %v841 = vadd.f32 %v789, %v840
    %v842 = vpop.f32.mrb[0].mxu0
    %v843 = vpop.f32.mrb[0].mxu0
    %v844 = vadd.f32 %v789, %v843
    %v845 = vpop.f32.mrb[0].mxu0
    %846 = vdwg.mxu0
    %847 = vst [vmem:[#allocation2] sm:$0xff] %v841
    %848 = vst [vmem:[#allocation2 + $0x8] sm:$0xff] %v844
    %s849 = scalar_lea.vmem %s9, 2
    %v850 = vld [vmem:[%s849] sm:$0x3]
    %s851 = scalar_lea.vmem %s10, 2
    %v852 = vld [vmem:[%s851] sm:$0x3]
    %v853 = vld [vmem:[#allocation2] sm:$0x3]
    %v854 = vpack.c.bf16 %v850, %v850
    %v859 = vunpack.c.l.b16 %v780
    %v860 = vunpack.c.l.b16 %v781
    %v861 = vunpack.c.l.b16 %v782
    %v862 = vunpack.c.l.b16 %v783
    %v863 = vpack.c.b16 %v860, %v859
    %v864 = vpack.c.b16 %v862, %v861
    %v868 = vsel %vm133, %v854, 0
    %870 = vmatprep.subr.bf16.mxu0 0
    %871 = vmatpush1.bf16.msra.mxu0 %v863
    %872 = vmatprep.subr.bf16.mxu0 0
    %873 = vmatpush1.bf16.msra.mxu0 %v864
    %874 = vmatprep.subr.bf16.mxu0 0
    %875 = vmatpush1.bf16.msra.mxu0 0
    %876 = vmatprep.subr.bf16.mxu0 0
    %877 = vmatpush1.bf16.msra.mxu0 0
    %878 = vmatprep.subr.bf16.mxu0 0
    %879 = vmatpush1.bf16.msra.mxu0 0
    %880 = vmatprep.subr.bf16.mxu0 0
    %881 = vmatpush1.bf16.msra.mxu0 0
    %882 = vmatprep.subr.bf16.mxu0 0
    %883 = vmatpush1.bf16.msra.mxu0 0
    %884 = vmatprep.subr.bf16.mxu0 0
    %885 = vmatpush1.bf16.msra.mxu0 0
    %886 = vmatprep.subr.bf16.mxu0 0
    %887 = vmatpush1.bf16.msra.mxu0 0
    %888 = vmatprep.subr.bf16.mxu0 0
    %889 = vmatpush1.bf16.msra.mxu0 0
    %890 = vmatprep.subr.bf16.mxu0 0
    %891 = vmatpush1.bf16.msra.mxu0 0
    %892 = vmatprep.subr.bf16.mxu0 0
    %893 = vmatpush1.bf16.msra.mxu0 0
    %894 = vmatprep.subr.bf16.mxu0 0
    %895 = vmatpush1.bf16.msra.mxu0 0
    %896 = vmatprep.subr.bf16.mxu0 0
    %897 = vmatpush1.bf16.msra.mxu0 0
    %898 = vmatprep.subr.bf16.mxu0 0
    %899 = vmatpush1.bf16.msra.mxu0 0
    %900 = vmatprep.subr.bf16.mxu0 0
    %901 = vmatpush1.bf16.msra.mxu0 0
    %902 = vmatprep.mubr.bf16.mxu0 0
    %903 = vmatmul.mubr.bf16.gmra.mrb[0].mxu0 %v868
    %v904 = vpop.f32.mrb[0].mxu0
    %v905 = vadd.f32 0.0, %v904
    %v906 = vpop.f32.mrb[0].mxu0
    %v907 = vpop.f32.mrb[0].mxu0
    %v908 = vpop.f32.mrb[0].mxu0
    %909 = vdwg.mxu0
    %v910 = vadd.f32 %v853, %v905
    %v911 = vxor.u32 %v910, 2147483648
    %v912 = vmul.f32 %v911, 1.442695
    %v913 = vpow.pop %v912
    %v914 = vadd.f32 %v913, 1.0
    %v915 = vrcp.pop %v914
    %v916 = vmul.f32 1.0, %v915
    %v917 = vtanh.pop %v910
    %919 = vrot.lane.b32.xlu0 %v852, 32
    %v920 = vpop.permute.xlu0 %919
    %v922 = vmul.f32 %v916, %v920
    %924 = vrot.lane.b32.xlu0 %v917, 32
    %v925 = vpop.permute.xlu0 %924
    %v927 = vmul.f32 %v916, %v925
    %929 = vrot.lane.b32.xlu0 %v927, 32
    %v930 = vpop.permute.xlu0 %929
    %v932 = vadd.f32 %v922, %v930
    %v933 = vtanh.pop %v932
    %935 = vrot.lane.b32.xlu0 %v933, 32
    %v936 = vpop.permute.xlu0 %935
    %v938 = vmul.f32 %v916, %v936
    %v939 = vld [vmem:[#allocation2 + $0x2] sm:$0x3]
    %v940 = vpack.c.bf16 %v938, %v938
    %942 = vrot.lane.b32.xlu0 %v940, 64
    %v943 = vpop.permute.xlu0 %942
    %v945 = vsel %vm133, %v943, 0
    %947 = vmatprep.subr.bf16.mxu0 0
    %948 = vmatpush1.bf16.msra.mxu0 %v863
    %949 = vmatprep.subr.bf16.mxu0 0
    %950 = vmatpush1.bf16.msra.mxu0 %v864
    %951 = vmatprep.subr.bf16.mxu0 0
    %952 = vmatpush1.bf16.msra.mxu0 0
    %953 = vmatprep.subr.bf16.mxu0 0
    %954 = vmatpush1.bf16.msra.mxu0 0
    %955 = vmatprep.subr.bf16.mxu0 0
    %956 = vmatpush1.bf16.msra.mxu0 0
    %957 = vmatprep.subr.bf16.mxu0 0
    %958 = vmatpush1.bf16.msra.mxu0 0
    %959 = vmatprep.subr.bf16.mxu0 0
    %960 = vmatpush1.bf16.msra.mxu0 0
    %961 = vmatprep.subr.bf16.mxu0 0
    %962 = vmatpush1.bf16.msra.mxu0 0
    %963 = vmatprep.subr.bf16.mxu0 0
    %964 = vmatpush1.bf16.msra.mxu0 0
    %965 = vmatprep.subr.bf16.mxu0 0
    %966 = vmatpush1.bf16.msra.mxu0 0
    %967 = vmatprep.subr.bf16.mxu0 0
    %968 = vmatpush1.bf16.msra.mxu0 0
    %969 = vmatprep.subr.bf16.mxu0 0
    %970 = vmatpush1.bf16.msra.mxu0 0
    %971 = vmatprep.subr.bf16.mxu0 0
    %972 = vmatpush1.bf16.msra.mxu0 0
    %973 = vmatprep.subr.bf16.mxu0 0
    %974 = vmatpush1.bf16.msra.mxu0 0
    %975 = vmatprep.subr.bf16.mxu0 0
    %976 = vmatpush1.bf16.msra.mxu0 0
    %977 = vmatprep.subr.bf16.mxu0 0
    %978 = vmatpush1.bf16.msra.mxu0 0
    %979 = vmatprep.mubr.bf16.mxu0 0
    %980 = vmatmul.mubr.bf16.gmra.mrb[0].mxu0 %v945
    %v981 = vpop.f32.mrb[0].mxu0
    %v982 = vadd.f32 0.0, %v981
    %v983 = vpop.f32.mrb[0].mxu0
    %v984 = vpop.f32.mrb[0].mxu0
    %v985 = vpop.f32.mrb[0].mxu0
    %986 = vdwg.mxu0
    %v987 = vadd.f32 %v939, %v982
    %v988 = vxor.u32 %v987, 2147483648
    %v989 = vmul.f32 %v988, 1.442695
    %v990 = vpow.pop %v989
    %v991 = vadd.f32 %v990, 1.0
    %v992 = vrcp.pop %v991
    %v993 = vmul.f32 1.0, %v992
    %v994 = vtanh.pop %v987
    %v995 = vmul.f32 %v993, %v932
    %997 = vrot.lane.b32.xlu0 %v994, 32
    %v998 = vpop.permute.xlu0 %997
    %v1000 = vmul.f32 %v993, %v998
    %1002 = vrot.lane.b32.xlu0 %v1000, 32
    %v1003 = vpop.permute.xlu0 %1002
    %v1005 = vadd.f32 %v995, %v1003
    %v1006 = vtanh.pop %v1005
    %1008 = vrot.lane.b32.xlu0 %v1006, 32
    %v1009 = vpop.permute.xlu0 %1008
    %v1011 = vmul.f32 %v993, %v1009
    %v1012 = vld [vmem:[#allocation2 + $0x4] sm:$0x3]
    %v1013 = vpack.c.bf16 %v1011, %v1011
    %1015 = vrot.lane.b32.xlu0 %v1013, 64
    %v1016 = vpop.permute.xlu0 %1015
    %v1018 = vsel %vm133, %v1016, 0
    %1020 = vmatprep.subr.bf16.mxu0 0
    %1021 = vmatpush1.bf16.msra.mxu0 %v863
    %1022 = vmatprep.subr.bf16.mxu0 0
    %1023 = vmatpush1.bf16.msra.mxu0 %v864
    %1024 = vmatprep.subr.bf16.mxu0 0
    %1025 = vmatpush1.bf16.msra.mxu0 0
    %1026 = vmatprep.subr.bf16.mxu0 0
    %1027 = vmatpush1.bf16.msra.mxu0 0
    %1028 = vmatprep.subr.bf16.mxu0 0
    %1029 = vmatpush1.bf16.msra.mxu0 0
    %1030 = vmatprep.subr.bf16.mxu0 0
    %1031 = vmatpush1.bf16.msra.mxu0 0
    %1032 = vmatprep.subr.bf16.mxu0 0
    %1033 = vmatpush1.bf16.msra.mxu0 0
    %1034 = vmatprep.subr.bf16.mxu0 0
    %1035 = vmatpush1.bf16.msra.mxu0 0
    %1036 = vmatprep.subr.bf16.mxu0 0
    %1037 = vmatpush1.bf16.msra.mxu0 0
    %1038 = vmatprep.subr.bf16.mxu0 0
    %1039 = vmatpush1.bf16.msra.mxu0 0
    %1040 = vmatprep.subr.bf16.mxu0 0
    %1041 = vmatpush1.bf16.msra.mxu0 0
    %1042 = vmatprep.subr.bf16.mxu0 0
    %1043 = vmatpush1.bf16.msra.mxu0 0
    %1044 = vmatprep.subr.bf16.mxu0 0
    %1045 = vmatpush1.bf16.msra.mxu0 0
    %1046 = vmatprep.subr.bf16.mxu0 0
    %1047 = vmatpush1.bf16.msra.mxu0 0
    %1048 = vmatprep.subr.bf16.mxu0 0
    %1049 = vmatpush1.bf16.msra.mxu0 0
    %1050 = vmatprep.subr.bf16.mxu0 0
    %1051 = vmatpush1.bf16.msra.mxu0 0
    %1052 = vmatprep.mubr.bf16.mxu0 0
    %1053 = vmatmul.mubr.bf16.gmra.mrb[0].mxu0 %v1018
    %v1054 = vpop.f32.mrb[0].mxu0
    %v1055 = vadd.f32 0.0, %v1054
    %v1056 = vpop.f32.mrb[0].mxu0
    %v1057 = vpop.f32.mrb[0].mxu0
    %v1058 = vpop.f32.mrb[0].mxu0
    %1059 = vdwg.mxu0
    %v1060 = vadd.f32 %v1012, %v1055
    %v1061 = vxor.u32 %v1060, 2147483648
    %v1062 = vmul.f32 %v1061, 1.442695
    %v1063 = vpow.pop %v1062
    %v1064 = vadd.f32 %v1063, 1.0
    %v1065 = vrcp.pop %v1064
    %v1066 = vmul.f32 1.0, %v1065
    %v1067 = vtanh.pop %v1060
    %v1068 = vmul.f32 %v1066, %v1005
    %1070 = vrot.lane.b32.xlu0 %v1067, 32
    %v1071 = vpop.permute.xlu0 %1070
    %v1073 = vmul.f32 %v1066, %v1071
    %1075 = vrot.lane.b32.xlu0 %v1073, 32
    %v1076 = vpop.permute.xlu0 %1075
    %v1078 = vadd.f32 %v1068, %v1076
    %v1079 = vtanh.pop %v1078
    %1081 = vrot.lane.b32.xlu0 %v1079, 32
    %v1082 = vpop.permute.xlu0 %1081
    %v1084 = vmul.f32 %v1066, %v1082
    %v1085 = vld [vmem:[#allocation2 + $0x6] sm:$0x3]
    %v1086 = vpack.c.bf16 %v1084, %v1084
    %1088 = vrot.lane.b32.xlu0 %v1086, 64
    %v1089 = vpop.permute.xlu0 %1088
    %v1091 = vsel %vm133, %v1089, 0
    %1093 = vmatprep.subr.bf16.mxu0 0
    %1094 = vmatpush1.bf16.msra.mxu0 %v863
    %1095 = vmatprep.subr.bf16.mxu0 0
    %1096 = vmatpush1.bf16.msra.mxu0 %v864
    %1097 = vmatprep.subr.bf16.mxu0 0
    %1098 = vmatpush1.bf16.msra.mxu0 0
    %1099 = vmatprep.subr.bf16.mxu0 0
    %1100 = vmatpush1.bf16.msra.mxu0 0
    %1101 = vmatprep.subr.bf16.mxu0 0
    %1102 = vmatpush1.bf16.msra.mxu0 0
    %1103 = vmatprep.subr.bf16.mxu0 0
    %1104 = vmatpush1.bf16.msra.mxu0 0
    %1105 = vmatprep.subr.bf16.mxu0 0
    %1106 = vmatpush1.bf16.msra.mxu0 0
    %1107 = vmatprep.subr.bf16.mxu0 0
    %1108 = vmatpush1.bf16.msra.mxu0 0
    %1109 = vmatprep.subr.bf16.mxu0 0
    %1110 = vmatpush1.bf16.msra.mxu0 0
    %1111 = vmatprep.subr.bf16.mxu0 0
    %1112 = vmatpush1.bf16.msra.mxu0 0
    %1113 = vmatprep.subr.bf16.mxu0 0
    %1114 = vmatpush1.bf16.msra.mxu0 0
    %1115 = vmatprep.subr.bf16.mxu0 0
    %1116 = vmatpush1.bf16.msra.mxu0 0
    %1117 = vmatprep.subr.bf16.mxu0 0
    %1118 = vmatpush1.bf16.msra.mxu0 0
    %1119 = vmatprep.subr.bf16.mxu0 0
    %1120 = vmatpush1.bf16.msra.mxu0 0
    %1121 = vmatprep.subr.bf16.mxu0 0
    %1122 = vmatpush1.bf16.msra.mxu0 0
    %1123 = vmatprep.subr.bf16.mxu0 0
    %1124 = vmatpush1.bf16.msra.mxu0 0
    %1125 = vmatprep.mubr.bf16.mxu0 0
    %1126 = vmatmul.mubr.bf16.gmra.mrb[0].mxu0 %v1091
    %v1127 = vpop.f32.mrb[0].mxu0
    %v1128 = vadd.f32 0.0, %v1127
    %v1129 = vpop.f32.mrb[0].mxu0
    %v1130 = vpop.f32.mrb[0].mxu0
    %v1131 = vpop.f32.mrb[0].mxu0
    %1132 = vdwg.mxu0
    %v1133 = vadd.f32 %v1085, %v1128
    %v1134 = vxor.u32 %v1133, 2147483648
    %v1135 = vmul.f32 %v1134, 1.442695
    %v1136 = vpow.pop %v1135
    %v1137 = vadd.f32 %v1136, 1.0
    %v1138 = vrcp.pop %v1137
    %v1139 = vmul.f32 1.0, %v1138
    %v1140 = vtanh.pop %v1133
    %v1141 = vmul.f32 %v1139, %v1078
    %1143 = vrot.lane.b32.xlu0 %v1140, 32
    %v1144 = vpop.permute.xlu0 %1143
    %v1146 = vmul.f32 %v1139, %v1144
    %1148 = vrot.lane.b32.xlu0 %v1146, 32
    %v1149 = vpop.permute.xlu0 %1148
    %v1151 = vadd.f32 %v1141, %v1149
    %v1152 = vtanh.pop %v1151
    %1154 = vrot.lane.b32.xlu0 %v1152, 32
    %v1155 = vpop.permute.xlu0 %1154
    %v1157 = vmul.f32 %v1139, %v1155
    %v1158 = vld [vmem:[#allocation2 + $0x8] sm:$0x3]
    %v1159 = vpack.c.bf16 %v1157, %v1157
    %1161 = vrot.lane.b32.xlu0 %v1159, 64
    %v1162 = vpop.permute.xlu0 %1161
    %v1164 = vsel %vm133, %v1162, 0
    %1166 = vmatprep.subr.bf16.mxu0 0
    %1167 = vmatpush1.bf16.msra.mxu0 %v863
    %1168 = vmatprep.subr.bf16.mxu0 0
    %1169 = vmatpush1.bf16.msra.mxu0 %v864
    %1170 = vmatprep.subr.bf16.mxu0 0
    %1171 = vmatpush1.bf16.msra.mxu0 0
    %1172 = vmatprep.subr.bf16.mxu0 0
    %1173 = vmatpush1.bf16.msra.mxu0 0
    %1174 = vmatprep.subr.bf16.mxu0 0
    %1175 = vmatpush1.bf16.msra.mxu0 0
    %1176 = vmatprep.subr.bf16.mxu0 0
    %1177 = vmatpush1.bf16.msra.mxu0 0
    %1178 = vmatprep.subr.bf16.mxu0 0
    %1179 = vmatpush1.bf16.msra.mxu0 0
    %1180 = vmatprep.subr.bf16.mxu0 0
    %1181 = vmatpush1.bf16.msra.mxu0 0
    %1182 = vmatprep.subr.bf16.mxu0 0
    %1183 = vmatpush1.bf16.msra.mxu0 0
    %1184 = vmatprep.subr.bf16.mxu0 0
    %1185 = vmatpush1.bf16.msra.mxu0 0
    %1186 = vmatprep.subr.bf16.mxu0 0
    %1187 = vmatpush1.bf16.msra.mxu0 0
    %1188 = vmatprep.subr.bf16.mxu0 0
    %1189 = vmatpush1.bf16.msra.mxu0 0
    %1190 = vmatprep.subr.bf16.mxu0 0
    %1191 = vmatpush1.bf16.msra.mxu0 0
    %1192 = vmatprep.subr.bf16.mxu0 0
    %1193 = vmatpush1.bf16.msra.mxu0 0
    %1194 = vmatprep.subr.bf16.mxu0 0
    %1195 = vmatpush1.bf16.msra.mxu0 0
    %1196 = vmatprep.subr.bf16.mxu0 0
    %1197 = vmatpush1.bf16.msra.mxu0 0
    %1198 = vmatprep.mubr.bf16.mxu0 0
    %1199 = vmatmul.mubr.bf16.gmra.mrb[0].mxu0 %v1164
    %v1200 = vpop.f32.mrb[0].mxu0
    %v1201 = vadd.f32 0.0, %v1200
    %v1202 = vpop.f32.mrb[0].mxu0
    %v1203 = vpop.f32.mrb[0].mxu0
    %v1204 = vpop.f32.mrb[0].mxu0
    %1205 = vdwg.mxu0
    %v1206 = vadd.f32 %v1158, %v1201
    %v1207 = vxor.u32 %v1206, 2147483648
    %v1208 = vmul.f32 %v1207, 1.442695
    %v1209 = vpow.pop %v1208
    %v1210 = vadd.f32 %v1209, 1.0
    %v1211 = vrcp.pop %v1210
    %v1212 = vmul.f32 1.0, %v1211
    %v1213 = vtanh.pop %v1206
    %v1214 = vmul.f32 %v1212, %v1151
    %1216 = vrot.lane.b32.xlu0 %v1213, 32
    %v1217 = vpop.permute.xlu0 %1216
    %v1219 = vmul.f32 %v1212, %v1217
    %1221 = vrot.lane.b32.xlu0 %v1219, 32
    %v1222 = vpop.permute.xlu0 %1221
    %v1224 = vadd.f32 %v1214, %v1222
    %v1225 = vtanh.pop %v1224
    %1227 = vrot.lane.b32.xlu0 %v1225, 32
    %v1228 = vpop.permute.xlu0 %1227
    %v1230 = vmul.f32 %v1212, %v1228
    %v1231 = vld [vmem:[#allocation2 + $0xa] sm:$0x3]
    %v1232 = vpack.c.bf16 %v1230, %v1230
    %1234 = vrot.lane.b32.xlu0 %v1232, 64
    %v1235 = vpop.permute.xlu0 %1234
    %v1237 = vsel %vm133, %v1235, 0
    %1239 = vmatprep.subr.bf16.mxu0 0
    %1240 = vmatpush1.bf16.msra.mxu0 %v863
    %1241 = vmatprep.subr.bf16.mxu0 0
    %1242 = vmatpush1.bf16.msra.mxu0 %v864
    %1243 = vmatprep.subr.bf16.mxu0 0
    %1244 = vmatpush1.bf16.msra.mxu0 0
    %1245 = vmatprep.subr.bf16.mxu0 0
    %1246 = vmatpush1.bf16.msra.mxu0 0
    %1247 = vmatprep.subr.bf16.mxu0 0
    %1248 = vmatpush1.bf16.msra.mxu0 0
    %1249 = vmatprep.subr.bf16.mxu0 0
    %1250 = vmatpush1.bf16.msra.mxu0 0
    %1251 = vmatprep.subr.bf16.mxu0 0
    %1252 = vmatpush1.bf16.msra.mxu0 0
    %1253 = vmatprep.subr.bf16.mxu0 0
    %1254 = vmatpush1.bf16.msra.mxu0 0
    %1255 = vmatprep.subr.bf16.mxu0 0
    %1256 = vmatpush1.bf16.msra.mxu0 0
    %1257 = vmatprep.subr.bf16.mxu0 0
    %1258 = vmatpush1.bf16.msra.mxu0 0
    %1259 = vmatprep.subr.bf16.mxu0 0
    %1260 = vmatpush1.bf16.msra.mxu0 0
    %1261 = vmatprep.subr.bf16.mxu0 0
    %1262 = vmatpush1.bf16.msra.mxu0 0
    %1263 = vmatprep.subr.bf16.mxu0 0
    %1264 = vmatpush1.bf16.msra.mxu0 0
    %1265 = vmatprep.subr.bf16.mxu0 0
    %1266 = vmatpush1.bf16.msra.mxu0 0
    %1267 = vmatprep.subr.bf16.mxu0 0
    %1268 = vmatpush1.bf16.msra.mxu0 0
    %1269 = vmatprep.subr.bf16.mxu0 0
    %1270 = vmatpush1.bf16.msra.mxu0 0
    %1271 = vmatprep.mubr.bf16.mxu0 0
    %1272 = vmatmul.mubr.bf16.gmra.mrb[0].mxu0 %v1237
    %v1273 = vpop.f32.mrb[0].mxu0
    %v1274 = vadd.f32 0.0, %v1273
    %v1275 = vpop.f32.mrb[0].mxu0
    %v1276 = vpop.f32.mrb[0].mxu0
    %v1277 = vpop.f32.mrb[0].mxu0
    %1278 = vdwg.mxu0
    %v1279 = vadd.f32 %v1231, %v1274
    %v1280 = vxor.u32 %v1279, 2147483648
    %v1281 = vmul.f32 %v1280, 1.442695
    %v1282 = vpow.pop %v1281
    %v1283 = vadd.f32 %v1282, 1.0
    %v1284 = vrcp.pop %v1283
    %v1285 = vmul.f32 1.0, %v1284
    %v1286 = vtanh.pop %v1279
    %v1287 = vmul.f32 %v1285, %v1224
    %1289 = vrot.lane.b32.xlu0 %v1286, 32
    %v1290 = vpop.permute.xlu0 %1289
    %v1292 = vmul.f32 %v1285, %v1290
    %1294 = vrot.lane.b32.xlu0 %v1292, 32
    %v1295 = vpop.permute.xlu0 %1294
    %v1297 = vadd.f32 %v1287, %v1295
    %v1298 = vtanh.pop %v1297
    %1300 = vrot.lane.b32.xlu0 %v1298, 32
    %v1301 = vpop.permute.xlu0 %1300
    %v1303 = vmul.f32 %v1285, %v1301
    %v1304 = vld [vmem:[#allocation2 + $0xc] sm:$0x3]
    %v1305 = vpack.c.bf16 %v1303, %v1303
    %1307 = vrot.lane.b32.xlu0 %v1305, 64
    %v1308 = vpop.permute.xlu0 %1307
    %v1310 = vsel %vm133, %v1308, 0
    %1312 = vmatprep.subr.bf16.mxu0 0
    %1313 = vmatpush1.bf16.msra.mxu0 %v863
    %1314 = vmatprep.subr.bf16.mxu0 0
    %1315 = vmatpush1.bf16.msra.mxu0 %v864
    %1316 = vmatprep.subr.bf16.mxu0 0
    %1317 = vmatpush1.bf16.msra.mxu0 0
    %1318 = vmatprep.subr.bf16.mxu0 0
    %1319 = vmatpush1.bf16.msra.mxu0 0
    %1320 = vmatprep.subr.bf16.mxu0 0
    %1321 = vmatpush1.bf16.msra.mxu0 0
    %1322 = vmatprep.subr.bf16.mxu0 0
    %1323 = vmatpush1.bf16.msra.mxu0 0
    %1324 = vmatprep.subr.bf16.mxu0 0
    %1325 = vmatpush1.bf16.msra.mxu0 0
    %1326 = vmatprep.subr.bf16.mxu0 0
    %1327 = vmatpush1.bf16.msra.mxu0 0
    %1328 = vmatprep.subr.bf16.mxu0 0
    %1329 = vmatpush1.bf16.msra.mxu0 0
    %1330 = vmatprep.subr.bf16.mxu0 0
    %1331 = vmatpush1.bf16.msra.mxu0 0
    %1332 = vmatprep.subr.bf16.mxu0 0
    %1333 = vmatpush1.bf16.msra.mxu0 0
    %1334 = vmatprep.subr.bf16.mxu0 0
    %1335 = vmatpush1.bf16.msra.mxu0 0
    %1336 = vmatprep.subr.bf16.mxu0 0
    %1337 = vmatpush1.bf16.msra.mxu0 0
    %1338 = vmatprep.subr.bf16.mxu0 0
    %1339 = vmatpush1.bf16.msra.mxu0 0
    %1340 = vmatprep.subr.bf16.mxu0 0
    %1341 = vmatpush1.bf16.msra.mxu0 0
    %1342 = vmatprep.subr.bf16.mxu0 0
    %1343 = vmatpush1.bf16.msra.mxu0 0
    %1344 = vmatprep.mubr.bf16.mxu0 0
    %1345 = vmatmul.mubr.bf16.gmra.mrb[0].mxu0 %v1310
    %v1346 = vpop.f32.mrb[0].mxu0
    %v1347 = vadd.f32 0.0, %v1346
    %v1348 = vpop.f32.mrb[0].mxu0
    %v1349 = vpop.f32.mrb[0].mxu0
    %v1350 = vpop.f32.mrb[0].mxu0
    %1351 = vdwg.mxu0
    %v1352 = vadd.f32 %v1304, %v1347
    %v1353 = vxor.u32 %v1352, 2147483648
    %v1354 = vmul.f32 %v1353, 1.442695
    %v1355 = vpow.pop %v1354
    %v1356 = vadd.f32 %v1355, 1.0
    %v1357 = vrcp.pop %v1356
    %v1358 = vmul.f32 1.0, %v1357
    %v1359 = vtanh.pop %v1352
    %v1360 = vmul.f32 %v1358, %v1297
    %1362 = vrot.lane.b32.xlu0 %v1359, 32
    %v1363 = vpop.permute.xlu0 %1362
    %v1365 = vmul.f32 %v1358, %v1363
    %1367 = vrot.lane.b32.xlu0 %v1365, 32
    %v1368 = vpop.permute.xlu0 %1367
    %v1370 = vadd.f32 %v1360, %v1368
    %v1371 = vtanh.pop %v1370
    %1373 = vrot.lane.b32.xlu0 %v1371, 32
    %v1374 = vpop.permute.xlu0 %1373
    %v1376 = vmul.f32 %v1358, %v1374
    %v1377 = vld [vmem:[#allocation2 + $0xe] sm:$0x3]
    %v1378 = vpack.c.bf16 %v1376, %v1376
    %1380 = vrot.lane.b32.xlu0 %v1378, 64
    %v1381 = vpop.permute.xlu0 %1380
    %v1383 = vsel %vm133, %v1381, 0
    %1385 = vmatprep.subr.bf16.mxu0 0
    %1386 = vmatpush1.bf16.msra.mxu0 %v863
    %1387 = vmatprep.subr.bf16.mxu0 0
    %1388 = vmatpush1.bf16.msra.mxu0 %v864
    %1389 = vmatprep.subr.bf16.mxu0 0
    %1390 = vmatpush1.bf16.msra.mxu0 0
    %1391 = vmatprep.subr.bf16.mxu0 0
    %1392 = vmatpush1.bf16.msra.mxu0 0
    %1393 = vmatprep.subr.bf16.mxu0 0
    %1394 = vmatpush1.bf16.msra.mxu0 0
    %1395 = vmatprep.subr.bf16.mxu0 0
    %1396 = vmatpush1.bf16.msra.mxu0 0
    %1397 = vmatprep.subr.bf16.mxu0 0
    %1398 = vmatpush1.bf16.msra.mxu0 0
    %1399 = vmatprep.subr.bf16.mxu0 0
    %1400 = vmatpush1.bf16.msra.mxu0 0
    %1401 = vmatprep.subr.bf16.mxu0 0
    %1402 = vmatpush1.bf16.msra.mxu0 0
    %1403 = vmatprep.subr.bf16.mxu0 0
    %1404 = vmatpush1.bf16.msra.mxu0 0
    %1405 = vmatprep.subr.bf16.mxu0 0
    %1406 = vmatpush1.bf16.msra.mxu0 0
    %1407 = vmatprep.subr.bf16.mxu0 0
    %1408 = vmatpush1.bf16.msra.mxu0 0
    %1409 = vmatprep.subr.bf16.mxu0 0
    %1410 = vmatpush1.bf16.msra.mxu0 0
    %1411 = vmatprep.subr.bf16.mxu0 0
    %1412 = vmatpush1.bf16.msra.mxu0 0
    %1413 = vmatprep.subr.bf16.mxu0 0
    %1414 = vmatpush1.bf16.msra.mxu0 0
    %1415 = vmatprep.subr.bf16.mxu0 0
    %1416 = vmatpush1.bf16.msra.mxu0 0
    %1417 = vmatprep.mubr.bf16.mxu0 0
    %1418 = vmatmul.mubr.bf16.gmra.mrb[0].mxu0 %v1383
    %v1419 = vpop.f32.mrb[0].mxu0
    %v1420 = vadd.f32 0.0, %v1419
    %v1421 = vpop.f32.mrb[0].mxu0
    %v1422 = vpop.f32.mrb[0].mxu0
    %v1423 = vpop.f32.mrb[0].mxu0
    %1424 = vdwg.mxu0
    %v1425 = vadd.f32 %v1377, %v1420
    %v1426 = vxor.u32 %v1425, 2147483648
    %v1427 = vmul.f32 %v1426, 1.442695
    %v1428 = vpow.pop %v1427
    %v1429 = vadd.f32 %v1428, 1.0
    %v1430 = vrcp.pop %v1429
    %v1431 = vmul.f32 1.0, %v1430
    %v1432 = vtanh.pop %v1425
    %v1433 = vmul.f32 %v1431, %v1370
    %1435 = vrot.lane.b32.xlu0 %v1432, 32
    %v1436 = vpop.permute.xlu0 %1435
    %v1438 = vmul.f32 %v1431, %v1436
    %1440 = vrot.lane.b32.xlu0 %v1438, 32
    %v1441 = vpop.permute.xlu0 %1440
    %v1443 = vadd.f32 %v1433, %v1441
    %v1444 = vtanh.pop %v1443
    %1446 = vrot.lane.b32.xlu0 %v1444, 32
    %v1447 = vpop.permute.xlu0 %1446
    %v1449 = vmul.f32 %v1431, %v1447
    %1451 = vrot.lane.b32.xlu0 %v1449, 64
    %v1452 = vpop.permute.xlu0 %1451
    %s1454 = scalar_lea.vmem [#allocation6], 2
    %1455 = vst.msk [vmem:[%s1454] sm:$0x3] %vm768, %v1452
    %1457 = vrot.lane.b32.xlu0 %v1443, 96
    %v1458 = vpop.permute.xlu0 %1457
    %s1460 = scalar_lea.vmem [#allocation8], 2
    %1461 = vst.msk [vmem:[%s1460] sm:$0x3] %vm768, %v1458
    %v1462 = vpack.c.bf16 %v1449, %v1449
    %v1463 = vld [vmem:[%s7] sm:$0xf]
    %v1464 = vld [vmem:[%s7 + $0x4] sm:$0xf]
    %v1465 = vld [vmem:[%s7 + $0x8] sm:$0xf]
    %v1466 = vld [vmem:[%s7 + $0xc] sm:$0xf]
    %v1467 = vld [vmem:[%s8] sm:$0x1]
    %v1469 = vlaneseq
    %v1470 = vshrl.u32 %v1469, 7
    %v1471 = vsub.s32 0, %v1470
    %v1472 = vrot.slane %v1467, %v1471
    %1475 = vrot.lane.b32.xlu0 %v1462, 64
    %v1476 = vpop.permute.xlu0 %1475
    %v1481 = vunpack.c.l.b16 %v1463
    %v1482 = vunpack.c.l.b16 %v1464
    %v1483 = vunpack.c.l.b16 %v1465
    %v1484 = vunpack.c.l.b16 %v1466
    %v1485 = vpack.c.b16 %v1482, %v1481
    %v1486 = vpack.c.b16 %v1484, %v1483
    %v1490 = vsel %vm133, %v1476, 0
    %1492 = vmatprep.subr.bf16.mxu0 0
    %1493 = vmatpush1.bf16.msra.mxu0 %v1485
    %1494 = vmatprep.subr.bf16.mxu0 0
    %1495 = vmatpush1.bf16.msra.mxu0 %v1486
    %1496 = vmatprep.subr.bf16.mxu0 0
    %1497 = vmatpush1.bf16.msra.mxu0 0
    %1498 = vmatprep.subr.bf16.mxu0 0
    %1499 = vmatpush1.bf16.msra.mxu0 0
    %1500 = vmatprep.subr.bf16.mxu0 0
    %1501 = vmatpush1.bf16.msra.mxu0 0
    %1502 = vmatprep.subr.bf16.mxu0 0
    %1503 = vmatpush1.bf16.msra.mxu0 0
    %1504 = vmatprep.subr.bf16.mxu0 0
    %1505 = vmatpush1.bf16.msra.mxu0 0
    %1506 = vmatprep.subr.bf16.mxu0 0
    %1507 = vmatpush1.bf16.msra.mxu0 0
    %1508 = vmatprep.subr.bf16.mxu0 0
    %1509 = vmatpush1.bf16.msra.mxu0 0
    %1510 = vmatprep.subr.bf16.mxu0 0
    %1511 = vmatpush1.bf16.msra.mxu0 0
    %1512 = vmatprep.subr.bf16.mxu0 0
    %1513 = vmatpush1.bf16.msra.mxu0 0
    %1514 = vmatprep.subr.bf16.mxu0 0
    %1515 = vmatpush1.bf16.msra.mxu0 0
    %1516 = vmatprep.subr.bf16.mxu0 0
    %1517 = vmatpush1.bf16.msra.mxu0 0
    %1518 = vmatprep.subr.bf16.mxu0 0
    %1519 = vmatpush1.bf16.msra.mxu0 0
    %1520 = vmatprep.subr.bf16.mxu0 0
    %1521 = vmatpush1.bf16.msra.mxu0 0
    %1522 = vmatprep.subr.bf16.mxu0 0
    %1523 = vmatpush1.bf16.msra.mxu0 0
    %1524 = vmatprep.mubr.bf16.mxu0 0
    %1525 = vmatmul.mubr.bf16.gmra.mrb[0].mxu0 %v1490
    %v1526 = vpop.f32.mrb[0].mxu0
    %v1527 = vadd.f32 %v1472, %v1526
    %v1528 = vpop.f32.mrb[0].mxu0
    %v1529 = vpop.f32.mrb[0].mxu0
    %v1530 = vpop.f32.mrb[0].mxu0
    %1531 = vdwg.mxu0
    %vm1532 = vcmask 517120
    %1533 = vst.msk [vmem:[#allocation4] sm:$0x3] %vm1532, %v1527
    // Predicated region
    $region46: #{rnn_forward.1} parent=1 // pred_check
      _
    $region47: #{rnn_forward.1} parent=1 // pred_check_branch
      %1535 = sbr.rel (0) target = $region49
    $region48: #{rnn_forward.1} parent=1 // pred_region
      %s1537 = ssub.s32 32, 32
      %1538 = vsyncadd [#allocation5], %s1537
      %s1540 = sshll.u32 [#allocation4], 4
      %s1541 = int_to_ptr.vmem [resolvable:$true] %s1540
      %1543 = dma.vmem_to_hbm [thread:$0]  %s1541, 32, %s11, [#allocation5]
    $region49: #{rnn_forward.1} parent=1 // pred_fallthru
      _
    // Predicated region
    $region50: #{rnn_forward.1} parent=1 // pred_check
      _
    $region51: #{rnn_forward.1} parent=1 // pred_check_branch
      %1545 = sbr.rel (0) target = $region53
    $region52: #{rnn_forward.1} parent=1 // pred_region
      %s1547 = ssub.s32 64, 64
      %1548 = vsyncadd [#allocation7], %s1547
      %s1549 = sshll.u32 [#allocation6], 4
      %s1550 = int_to_ptr.vmem [resolvable:$true] %s1549
      %1555 = dma.vmem_to_hbm [thread:$0]  %s1550, 64, %s12, [#allocation7], 32, 32, 2
    $region53: #{rnn_forward.1} parent=1 // pred_fallthru
      _
    // Predicated region
    $region54: #{rnn_forward.1} parent=1 // pred_check
      _
    $region55: #{rnn_forward.1} parent=1 // pred_check_branch
      %1557 = sbr.rel (0) target = $region57
    $region56: #{rnn_forward.1} parent=1 // pred_region
      %s1559 = ssub.s32 64, 64
      %1560 = vsyncadd [#allocation7], %s1559
      %s1561 = sshll.u32 [#allocation8], 4
      %s1562 = int_to_ptr.vmem [resolvable:$true] %s1561
      %1567 = dma.vmem_to_hbm [thread:$0]  %s1562, 64, %s13, [#allocation7], 32, 32, 2
    $region57: #{rnn_forward.1} parent=1 // pred_fallthru
      _
    // Predicated region
    $region58: #{rnn_forward.1} parent=1 // pred_check
      _
    $region59: #{rnn_forward.1} parent=1 // pred_check_branch
      %1569 = sbr.rel (0) target = $region61
    $region60: #{rnn_forward.1} parent=1 // pred_region
      %1570 = dma.done [#allocation5], 32
    $region61: #{rnn_forward.1} parent=1 // pred_fallthru
      _
    // Predicated region
    $region62: #{rnn_forward.1} parent=1 // pred_check
      _
    $region63: #{rnn_forward.1} parent=1 // pred_check_branch
      %1572 = sbr.rel (0) target = $region65
    $region64: #{rnn_forward.1} parent=1 // pred_region
      %1573 = dma.done [#allocation7], 64
    $region65: #{rnn_forward.1} parent=1 // pred_fallthru
      _
    // Predicated region
    $region66: #{rnn_forward.1} parent=1 // pred_check
      _
    $region67: #{rnn_forward.1} parent=1 // pred_check_branch
      %1575 = sbr.rel (0) target = $region69
    $region68: #{rnn_forward.1} parent=1 // pred_region
      %1576 = dma.done [#allocation7], 64
    $region69: #{rnn_forward.1} parent=1 // pred_fallthru
      _
    %1577 = vsyncpa [#allocation5], 1
    %1578 = vsyncpa [#allocation7], 1

</llo_original>
